<compile_context>
chip_gen: v7x
topology: tpu7x:2x2x1
jax: 0.10.0
libtpu: 0.0.40
codegen_flags: <defaults>
</compile_context>

<pallas_src>
import jax
import jax.numpy as jnp
from jax.experimental import pallas as pl
from jax.experimental.pallas import tpu as pltpu

D_IN, H1, H2, D_OUT = 3600, 128, 64, 1


def _round_up(n, m):
    return ((n + m - 1) // m) * m


def _is_v7x():
    try:
        return "v7" in jax.devices()[0].device_kind.lower()
    except Exception:
        return False


def mlp_kernel(x_ref, w1_ref, b1_ref, w2_ref, b2_ref, w3r_ref, b3_ref, o_ref):
    # Layer 1 (MXU) + bias + ReLU, f32 accumulation (bf16 inputs supported).
    h1 = jnp.dot(x_ref[...], w1_ref[...], preferred_element_type=jnp.float32)
    h1 = jnp.maximum(h1 + b1_ref[...], 0.0)
    # Layer 2 (MXU) + bias + ReLU.
    h2 = jnp.dot(h1, w2_ref[...], preferred_element_type=jnp.float32)
    h2 = jnp.maximum(h2 + b2_ref[...], 0.0)
    # Layer 3: single output column -> keep it off the MXU.  VPU elementwise
    # multiply + XLU lane reduction uses otherwise-idle slots; the lane-sparse
    # (tile_m, 1) store is noise next to the 3600-wide input stream.
    out = jnp.sum(h2 * w3r_ref[...], axis=-1, keepdims=True) + b3_ref[...]
    o_ref[...] = out.astype(o_ref.dtype)


def _pallas_mlp(x, w1, b1, w2, b2, w3_row, b3, *, tile_m, vmem_limit_bytes):
    B = x.shape[0]
    grid = (pl.cdiv(B, tile_m),)  # ragged tail handled by Pallas block padding

    def const_spec(shape):
        # Constant-index blocks: stay resident in VMEM across grid steps.
        return pl.BlockSpec(shape, lambda i: (0, 0))

    return pl.pallas_call(
        mlp_kernel,
        out_shape=jax.ShapeDtypeStruct((B, D_OUT), jnp.float32),
        grid_spec=pltpu.PrefetchScalarGridSpec(
            num_scalar_prefetch=0,
            grid=grid,
            in_specs=[
                pl.BlockSpec((tile_m, D_IN), lambda i: (i, 0)),  # x tile (streamed)
                const_spec((D_IN, H1)),   # w1
                const_spec((1, H1)),      # b1
                const_spec((H1, H2)),     # w2
                const_spec((1, H2)),      # b2
                const_spec((1, H2)),      # w3 as a row vector
                const_spec((1, D_OUT)),   # b3
            ],
            out_specs=pl.BlockSpec((tile_m, D_OUT), lambda i: (i, 0)),
        ),
        compiler_params=pltpu.CompilerParams(
            # Batch axis is embarrassingly parallel -> megacore sharding on
            # multi-TensorCore chips (tile_m is chosen so the grid has >= 2
            # steps there).
            dimension_semantics=("parallel",),
            vmem_limit_bytes=vmem_limit_bytes,
        ),
    )(x, w1, b1, w2, b2, w3_row, b3)


def mlp_forward(x, params, *, tile_m=None, cast_x_to_bf16=False):
    """x: (B, 3600) f32 or bf16 -> (B, 1) f32.

    tile_m: batch rows per grid step.  Default 512 (1024 for bf16 on v7x),
    rounded/clamped so any batch size works without wrapper-side padding.
    cast_x_to_bf16: only use when the cast can fuse into x's producer; a
    standalone astype of an f32 jit input adds an extra HBM pass over x.
    """
    w1, b1, w2, b2, w3, b3 = params
    w3_row = w3.reshape(1, H2)  # (H2, 1) -> (1, H2) row for the in-kernel reduction

    if cast_x_to_bf16 and x.dtype == jnp.float32:
        x = x.astype(jnp.bfloat16)
    if x.dtype == jnp.bfloat16:
        # Match w1 to x so layer 1 is a native bf16 MXU matmul (still f32
        # accumulation).  Casting the ~460K-param w1 is negligible.
        w1 = w1.astype(jnp.bfloat16)

    B = x.shape[0]
    v7x = _is_v7x()

    if tile_m is None:
        tile_m = 1024 if (x.dtype == jnp.bfloat16 and v7x) else 512
    tile_m = max(8, min(_round_up(tile_m, 8), _round_up(B, 8), 2048))
    if v7x and B > 8:
        # Ensure >= 2 grid steps so both v7x TensorCores get work.
        tile_m = min(tile_m, max(8, _round_up(pl.cdiv(B, 2), 8)))

    # VMEM budget: double-buffered x stream + (worst-case double-buffered)
    # weights + slack for biases/intermediates/output.  Cap below v7x's
    # 64 MiB/TC physical VMEM.
    x_buf_bytes = 2 * tile_m * D_IN * x.dtype.itemsize
    w_buf_bytes = 2 * (D_IN * H1 + H1 * H2) * w1.dtype.itemsize
    vmem_limit_bytes = min(
        int(1.15 * (x_buf_bytes + w_buf_bytes)) + 4 * 1024 * 1024,
        56 * 1024 * 1024,
    )

    return _pallas_mlp(
        x, w1, b1, w2, b2, w3_row, b3,
        tile_m=tile_m, vmem_limit_bytes=vmem_limit_bytes,
    )


def init_params(key):
    """Deterministic synthetic parameters matching nn.Linear shapes.

    Stored as (in, out) so the kernel computes x @ W + b directly
    (equivalent to PyTorch's x @ W.T + b with W of shape (out, in))."""
    k1, k2, k3, k4, k5, k6 = jax.random.split(key, 6)
    s1 = 1.0 / jnp.sqrt(D_IN)
    s2 = 1.0 / jnp.sqrt(H1)
    s3 = 1.0 / jnp.sqrt(H2)
    w1 = jax.random.uniform(k1, (D_IN, H1), jnp.float32, -s1, s1)
    b1 = jax.random.uniform(k2, (1, H1), jnp.float32, -s1, s1)
    w2 = jax.random.uniform(k3, (H1, H2), jnp.float32, -s2, s2)
    b2 = jax.random.uniform(k4, (1, H2), jnp.float32, -s2, s2)
    w3 = jax.random.uniform(k5, (H2, D_OUT), jnp.float32, -s3, s3)
    b3 = jax.random.uniform(k6, (1, D_OUT), jnp.float32, -s3, s3)
    return (w1, b1, w2, b2, w3, b3)


def mlp_reference(x, params):
    w1, b1, w2, b2, w3, b3 = params
    h1 = jnp.maximum(x @ w1 + b1, 0.0)
    h2 = jnp.maximum(h1 @ w2 + b2, 0.0)
    return h2 @ w3 + b3


if __name__ == "__main__":
    key = jax.random.PRNGKey(0)
    kx, kp = jax.random.split(key)

    params = init_params(kp)

    # --- f32 path, small batch (tile_m clamps to 8, grid of 1) -------------
    B = 8
    x = jax.random.normal(kx, (B, D_IN), jnp.float32)
    out = jax.block_until_ready(mlp_forward(x, params))
    ref = mlp_reference(x, params)
    assert out.shape == (B, D_OUT)
    assert jnp.allclose(out, ref, atol=1e-4, rtol=1e-4), "f32 mismatch vs reference"

    # --- bf16-at-rest input path (no wrapper cast of a big f32 array) ------
    x_bf = x.astype(jnp.bfloat16)  # stands in for an upstream bf16 producer
    out_bf = jax.block_until_ready(mlp_forward(x_bf, params))
    w1, b1, w2, b2, w3, b3 = params
    params_bf = (w1.astype(jnp.bfloat16).astype(jnp.float32), b1, w2, b2, w3, b3)
    ref_bf = mlp_reference(x_bf.astype(jnp.float32), params_bf)
    assert out_bf.shape == (B, D_OUT)
    assert jnp.allclose(out_bf, ref_bf, atol=1e-2, rtol=1e-2), "bf16 mismatch"

    # --- ragged batch: grid = cdiv(13, 8) = 2, partial last tile, no pad ---
    B2 = 13
    x2 = jax.random.normal(kx, (B2, D_IN), jnp.float32)
    out2 = jax.block_until_ready(mlp_forward(x2, params, tile_m=8))
    ref2 = mlp_reference(x2, params)
    assert out2.shape == (B2, D_OUT)
    assert jnp.allclose(out2, ref2, atol=1e-4, rtol=1e-4), "ragged-batch mismatch"

    print("KERNEL_OK")
</pallas_src>

<mosaic_0001>
module attributes {stable_mosaic.version = 11 : i64} {
  func.func @mlp_kernel(%arg0: i32, %arg1: memref<8x3600xf32, #tpu.memory_space<vmem>>, %arg2: memref<3600x128xf32, #tpu.memory_space<vmem>>, %arg3: memref<1x128xf32, #tpu.memory_space<vmem>>, %arg4: memref<128x64xf32, #tpu.memory_space<vmem>>, %arg5: memref<1x64xf32, #tpu.memory_space<vmem>>, %arg6: memref<1x64xf32, #tpu.memory_space<vmem>>, %arg7: memref<1x1xf32, #tpu.memory_space<vmem>>, %arg8: memref<8x1xf32, #tpu.memory_space<vmem>>) attributes {dimension_semantics = [#tpu.dimension_semantics<parallel>], iteration_bounds = array<i64: 1>, scalar_prefetch = 0 : i64, scratch_operands = 0 : i64, tpu.core_type = #tpu.core_type<tc>, window_params = [{transform_indices = @transform_0, window_bounds = array<i64: 8, 3600>}, {pipeline_mode = #tpu.pipeline_mode<synchronous>, transform_indices = @transform_1, window_bounds = array<i64: 3600, 128>}, {pipeline_mode = #tpu.pipeline_mode<synchronous>, transform_indices = @transform_2, window_bounds = array<i64: 1, 128>}, {pipeline_mode = #tpu.pipeline_mode<synchronous>, transform_indices = @transform_3, window_bounds = array<i64: 128, 64>}, {pipeline_mode = #tpu.pipeline_mode<synchronous>, transform_indices = @transform_4, window_bounds = array<i64: 1, 64>}, {pipeline_mode = #tpu.pipeline_mode<synchronous>, transform_indices = @transform_5, window_bounds = array<i64: 1, 64>}, {pipeline_mode = #tpu.pipeline_mode<synchronous>, transform_indices = @transform_6, window_bounds = array<i64: 1, 1>}, {transform_indices = @transform_7, window_bounds = array<i64: 8, 1>}]} {
    %c0 = arith.constant 0 : index
    %c0_0 = arith.constant 0 : index
    %0 = vector.load %arg1[%c0, %c0_0] : memref<8x3600xf32, #tpu.memory_space<vmem>>, vector<8x3600xf32>
    %c0_1 = arith.constant 0 : index
    %c0_2 = arith.constant 0 : index
    %1 = vector.load %arg2[%c0_1, %c0_2] : memref<3600x128xf32, #tpu.memory_space<vmem>>, vector<3600x128xf32>
    %cst = arith.constant dense<0.000000e+00> : vector<8x128xf32>
    %2 = tpu.matmul %0, %1, %cst {dimension_numbers = #tpu.dot_dimension_numbers<[1], [0], [0], [1], [0, 0, 1, 1], [], []>} : vector<8x3600xf32>, vector<3600x128xf32>, vector<8x128xf32> -> vector<8x128xf32>
    %c0_3 = arith.constant 0 : index
    %c0_4 = arith.constant 0 : index
    %3 = vector.load %arg3[%c0_3, %c0_4] : memref<1x128xf32, #tpu.memory_space<vmem>>, vector<1x128xf32>
    %4 = vector.broadcast %3 : vector<1x128xf32> to vector<8x128xf32>
    %5 = arith.addf %2, %4 : vector<8x128xf32>
    %cst_5 = arith.constant 0.000000e+00 : f32
    %6 = vector.broadcast %cst_5 : f32 to vector<8x128xf32>
    %7 = arith.maximumf %5, %6 : vector<8x128xf32>
    %c0_6 = arith.constant 0 : index
    %c0_7 = arith.constant 0 : index
    %8 = vector.load %arg4[%c0_6, %c0_7] : memref<128x64xf32, #tpu.memory_space<vmem>>, vector<128x64xf32>
    %cst_8 = arith.constant dense<0.000000e+00> : vector<8x64xf32>
    %9 = tpu.matmul %7, %8, %cst_8 {dimension_numbers = #tpu.dot_dimension_numbers<[1], [0], [0], [1], [0, 0, 1, 1], [], []>} : vector<8x128xf32>, vector<128x64xf32>, vector<8x64xf32> -> vector<8x64xf32>
    %c0_9 = arith.constant 0 : index
    %c0_10 = arith.constant 0 : index
    %10 = vector.load %arg5[%c0_9, %c0_10] : memref<1x64xf32, #tpu.memory_space<vmem>>, vector<1x64xf32>
    %11 = vector.broadcast %10 : vector<1x64xf32> to vector<8x64xf32>
    %12 = arith.addf %9, %11 : vector<8x64xf32>
    %cst_11 = arith.constant 0.000000e+00 : f32
    %13 = vector.broadcast %cst_11 : f32 to vector<8x64xf32>
    %14 = arith.maximumf %12, %13 : vector<8x64xf32>
    %c0_12 = arith.constant 0 : index
    %c0_13 = arith.constant 0 : index
    %15 = vector.load %arg6[%c0_12, %c0_13] : memref<1x64xf32, #tpu.memory_space<vmem>>, vector<1x64xf32>
    %16 = vector.broadcast %15 : vector<1x64xf32> to vector<8x64xf32>
    %17 = arith.mulf %14, %16 : vector<8x64xf32>
    %cst_14 = arith.constant dense<0.000000e+00> : vector<8xf32>
    %18 = vector.multi_reduction <add>, %17, %cst_14 [1] : vector<8x64xf32> to vector<8xf32>
    %19 = vector.shape_cast %18 : vector<8xf32> to vector<8x1xf32>
    %c0_15 = arith.constant 0 : index
    %c0_16 = arith.constant 0 : index
    %20 = vector.load %arg7[%c0_15, %c0_16] : memref<1x1xf32, #tpu.memory_space<vmem>>, vector<1x1xf32>
    %21 = vector.broadcast %20 : vector<1x1xf32> to vector<8x1xf32>
    %22 = arith.addf %19, %21 : vector<8x1xf32>
    %c0_17 = arith.constant 0 : index
    %c0_18 = arith.constant 0 : index
    %23 = vector.load %arg8[%c0_17, %c0_18] : memref<8x1xf32, #tpu.memory_space<vmem>>, vector<8x1xf32>
    tpu.vector_store %arg8[%c0_17, %c0_18], %22 {strides = array<i32>} : memref<8x1xf32, #tpu.memory_space<vmem>>, vector<8x1xf32>,
    return
  }
  func.func @transform_0(%arg0: i32) -> (i32, i32) {
    %c0_i32 = arith.constant 0 : i32
    %c0_i32_0 = arith.constant 0 : i32
    return %arg0, %c0_i32 : i32, i32
  }
  func.func @transform_1(%arg0: i32) -> (i32, i32) {
    %c0_i32 = arith.constant 0 : i32
    %c0_i32_0 = arith.constant 0 : i32
    %c0_i32_1 = arith.constant 0 : i32
    return %c0_i32, %c0_i32_0 : i32, i32
  }
  func.func @transform_2(%arg0: i32) -> (i32, i32) {
    %c0_i32 = arith.constant 0 : i32
    %c0_i32_0 = arith.constant 0 : i32
    %c0_i32_1 = arith.constant 0 : i32
    return %c0_i32, %c0_i32_0 : i32, i32
  }
  func.func @transform_3(%arg0: i32) -> (i32, i32) {
    %c0_i32 = arith.constant 0 : i32
    %c0_i32_0 = arith.constant 0 : i32
    %c0_i32_1 = arith.constant 0 : i32
    return %c0_i32, %c0_i32_0 : i32, i32
  }
  func.func @transform_4(%arg0: i32) -> (i32, i32) {
    %c0_i32 = arith.constant 0 : i32
    %c0_i32_0 = arith.constant 0 : i32
    %c0_i32_1 = arith.constant 0 : i32
    return %c0_i32, %c0_i32_0 : i32, i32
  }
  func.func @transform_5(%arg0: i32) -> (i32, i32) {
    %c0_i32 = arith.constant 0 : i32
    %c0_i32_0 = arith.constant 0 : i32
    %c0_i32_1 = arith.constant 0 : i32
    return %c0_i32, %c0_i32_0 : i32, i32
  }
  func.func @transform_6(%arg0: i32) -> (i32, i32) {
    %c0_i32 = arith.constant 0 : i32
    %c0_i32_0 = arith.constant 0 : i32
    %c0_i32_1 = arith.constant 0 : i32
    return %c0_i32, %c0_i32_0 : i32, i32
  }
  func.func @transform_7(%arg0: i32) -> (i32, i32) {
    %c0_i32 = arith.constant 0 : i32
    %c0_i32_0 = arith.constant 0 : i32
    return %arg0, %c0_i32 : i32, i32
  }
}

</mosaic_0001>

<llo_original>
// kernel: tpu_custom_call.1
$region0: #{tpu_custom_call.1}
  #allocation0 [shape = 'u32[]', space=smem, size = 0x4, offset = 0x4, fixed_abs, tag = 'smem constant byte address 0x4 - core index']
  #allocation1 [shape = 'u32[144,128]{1,0:T(1,128)}', space=vmem, size = 0x12000, scoped, tag = 'internal scratch']
  #allocation2 [shape = 'f32[1,1]{1,0:T(1,128)S(1)}', space=vmem, size = 0x200, scoped, tag = 'scoped memory for tpu_custom_call.1']
  %s0 = inlined_call_operand.hbm [shape: f32[8,3600], index: 0, kind: input, shape index: {}]
  %s1 = inlined_call_operand.hbm [shape: f32[3600,128], index: 1, kind: input, shape index: {}]
  %s2 = inlined_call_operand.hbm [shape: f32[1,128], index: 2, kind: input, shape index: {}]
  %s3 = inlined_call_operand.vmem [shape: f32[128,64], index: 3, kind: input, shape index: {}]
  %s4 = inlined_call_operand.hbm [shape: f32[1,64], index: 4, kind: input, shape index: {}]
  %s5 = inlined_call_operand.hbm [shape: f32[1,64], index: 5, kind: input, shape index: {}]
  %s6 = inlined_call_operand.<no memory space> [shape: f32[1,1], index: 6, kind: input, shape index: {}]
  %s7 = inlined_call_operand.vmem [shape: f32[8,1], index: 7, kind: output, shape index: {}]
  %s8 = sld [smem:[#allocation0]]
  $region58: #{tpu_custom_call.1} parent=0
    _
  %s10 = ssub.s32 1, %s8
  %s11 = scalar_select 0, %s10, %s8
  %v12 = vstv %s6
  %13 = vst [vmem:[#allocation2] sm:$0x1] %v12
  $region1: #{tpu_custom_call.1} parent=0
    #allocation3 [shape = 'u8[118784]{0}', space=vmem, size = 0x1d000, scoped, tag = 'input window, operand 0, single buffered']
    #allocation4 [shape = 's32[1]{0}', space=sflag, size = 0x4, scoped, tag = 'scoped memory for tpu_custom_call.1']
    #allocation5 [shape = 'u8[1843200]{0}', space=vmem, size = 0x1c2000, scoped, tag = 'input window, operand 1, single buffered']
    #allocation6 [shape = 's32[1]{0}', space=sflag, size = 0x4, scoped, tag = 'scoped memory for tpu_custom_call.1']
    #allocation7 [shape = 'u8[512]{0}', space=vmem, size = 0x400, scoped, tag = 'input window, operand 2, single buffered']
    #allocation8 [shape = 'u8[512]{0}', space=vmem, size = 0x400, scoped, tag = 'input window, operand 4, single buffered']
    #allocation9 [shape = 's32[1]{0}', space=sflag, size = 0x4, scoped, tag = 'scoped memory for tpu_custom_call.1']
    #allocation10 [shape = 'u8[512]{0}', space=vmem, size = 0x400, scoped, tag = 'input window, operand 5, single buffered']
    %14 = vsyncpa [#allocation4], 0
    %15 = vsyncpa [#allocation6], 0
    %16 = vsyncpa [#allocation9], 0
    // Predicated region
    $region2: #{tpu_custom_call.1} parent=1 // pred_check
      _
    $region3: #{tpu_custom_call.1} parent=1 // pred_check_branch
      %18 = sbr.rel (0) target = $region5
    $region4: #{tpu_custom_call.1} parent=1 // pred_region
      %s20 = ssub.s32 3712, 3712
      %21 = vsyncadd [#allocation4], %s20
      %s23 = sshll.u32 [#allocation3], 4
      %s24 = int_to_ptr.vmem [resolvable:$true] %s23
      %26 = dma.hbm_to_vmem [thread:$0]  %s0, 3712, %s24, [#allocation4]
    $region5: #{tpu_custom_call.1} parent=1 // pred_fallthru
      _
    // Predicated region
    $region6: #{tpu_custom_call.1} parent=1 // pred_check
      _
    $region7: #{tpu_custom_call.1} parent=1 // pred_check_branch
      %28 = sbr.rel (0) target = $region9
    $region8: #{tpu_custom_call.1} parent=1 // pred_region
      %s30 = ssub.s32 57600, 57600
      %31 = vsyncadd [#allocation6], %s30
      %s32 = sshll.u32 [#allocation5], 4
      %s33 = int_to_ptr.vmem [resolvable:$true] %s32
      %38 = dma.hbm_to_vmem [thread:$0]  %s1, 57600, %s33, [#allocation6], 128, 128, 8
    $region9: #{tpu_custom_call.1} parent=1 // pred_fallthru
      _
    // Predicated region
    $region10: #{tpu_custom_call.1} parent=1 // pred_check
      _
    $region11: #{tpu_custom_call.1} parent=1 // pred_check_branch
      %40 = sbr.rel (0) target = $region13
    $region12: #{tpu_custom_call.1} parent=1 // pred_region
      %s42 = ssub.s32 16, 16
      %43 = vsyncadd [#allocation6], %s42
      %s45 = sshll.u32 [#allocation7], 4
      %s46 = int_to_ptr.vmem [resolvable:$true] %s45
      %48 = dma.hbm_to_vmem [thread:$0]  %s2, 16, %s46, [#allocation6]
    $region13: #{tpu_custom_call.1} parent=1 // pred_fallthru
      _
    // Predicated region
    $region14: #{tpu_custom_call.1} parent=1 // pred_check
      _
    $region15: #{tpu_custom_call.1} parent=1 // pred_check_branch
      %50 = sbr.rel (0) target = $region17
    $region16: #{tpu_custom_call.1} parent=1 // pred_region
      _
    $region17: #{tpu_custom_call.1} parent=1 // pred_fallthru
      _
    // Predicated region
    $region18: #{tpu_custom_call.1} parent=1 // pred_check
      _
    $region19: #{tpu_custom_call.1} parent=1 // pred_check_branch
      %52 = sbr.rel (0) target = $region21
    $region20: #{tpu_custom_call.1} parent=1 // pred_region
      %s54 = ssub.s32 16, 16
      %55 = vsyncadd [#allocation9], %s54
      %s57 = sshll.u32 [#allocation8], 4
      %s58 = int_to_ptr.vmem [resolvable:$true] %s57
      %60 = dma.hbm_to_vmem [thread:$0]  %s4, 16, %s58, [#allocation9]
    $region21: #{tpu_custom_call.1} parent=1 // pred_fallthru
      _
    // Predicated region
    $region22: #{tpu_custom_call.1} parent=1 // pred_check
      _
    $region23: #{tpu_custom_call.1} parent=1 // pred_check_branch
      %62 = sbr.rel (0) target = $region25
    $region24: #{tpu_custom_call.1} parent=1 // pred_region
      %s64 = ssub.s32 16, 16
      %65 = vsyncadd [#allocation9], %s64
      %s67 = sshll.u32 [#allocation10], 4
      %s68 = int_to_ptr.vmem [resolvable:$true] %s67
      %70 = dma.hbm_to_vmem [thread:$0]  %s5, 16, %s68, [#allocation9]
    $region25: #{tpu_custom_call.1} parent=1 // pred_fallthru
      _
    // Predicated region
    $region26: #{tpu_custom_call.1} parent=1 // pred_check
      _
    $region27: #{tpu_custom_call.1} parent=1 // pred_check_branch
      %72 = sbr.rel (0) target = $region29
    $region28: #{tpu_custom_call.1} parent=1 // pred_region
      _
    $region29: #{tpu_custom_call.1} parent=1 // pred_fallthru
      _
    // Predicated region
    $region30: #{tpu_custom_call.1} parent=1 // pred_check
      _
    $region31: #{tpu_custom_call.1} parent=1 // pred_check_branch
      %74 = sbr.rel (0) target = $region33
    $region32: #{tpu_custom_call.1} parent=1 // pred_region
      %75 = dma.done [#allocation4], 3712
    $region33: #{tpu_custom_call.1} parent=1 // pred_fallthru
      _
    // Predicated region
    $region34: #{tpu_custom_call.1} parent=1 // pred_check
      _
    $region35: #{tpu_custom_call.1} parent=1 // pred_check_branch
      %77 = sbr.rel (0) target = $region37
    $region36: #{tpu_custom_call.1} parent=1 // pred_region
      %78 = dma.done [#allocation6], 57600
    $region37: #{tpu_custom_call.1} parent=1 // pred_fallthru
      _
    // Predicated region
    $region38: #{tpu_custom_call.1} parent=1 // pred_check
      _
    $region39: #{tpu_custom_call.1} parent=1 // pred_check_branch
      %80 = sbr.rel (0) target = $region41
    $region40: #{tpu_custom_call.1} parent=1 // pred_region
      %81 = dma.done [#allocation6], 16
    $region41: #{tpu_custom_call.1} parent=1 // pred_fallthru
      _
    // Predicated region
    $region42: #{tpu_custom_call.1} parent=1 // pred_check
      _
    $region43: #{tpu_custom_call.1} parent=1 // pred_check_branch
      %83 = sbr.rel (0) target = $region45
    $region44: #{tpu_custom_call.1} parent=1 // pred_region
      %84 = dma.done [#allocation9], 16
    $region45: #{tpu_custom_call.1} parent=1 // pred_fallthru
      _
    // Predicated region
    $region46: #{tpu_custom_call.1} parent=1 // pred_check
      _
    $region47: #{tpu_custom_call.1} parent=1 // pred_check_branch
      %86 = sbr.rel (0) target = $region49
    $region48: #{tpu_custom_call.1} parent=1 // pred_region
      %87 = dma.done [#allocation9], 16
    $region49: #{tpu_custom_call.1} parent=1 // pred_fallthru
      _
    %v88 = vld [vmem:[#allocation3] sm:$0xff]
    %v89 = vld [vmem:[#allocation3 + $0x8] sm:$0xff]
    %v90 = vld [vmem:[#allocation3 + $0x10] sm:$0xff]
    %v91 = vld [vmem:[#allocation3 + $0x18] sm:$0xff]
    %v92 = vld [vmem:[#allocation3 + $0x20] sm:$0xff]
    %v93 = vld [vmem:[#allocation3 + $0x28] sm:$0xff]
    %v94 = vld [vmem:[#allocation3 + $0x30] sm:$0xff]
    %v95 = vld [vmem:[#allocation3 + $0x38] sm:$0xff]
    %v96 = vld [vmem:[#allocation3 + $0x40] sm:$0xff]
    %v97 = vld [vmem:[#allocation3 + $0x48] sm:$0xff]
    %v98 = vld [vmem:[#allocation3 + $0x50] sm:$0xff]
    %v99 = vld [vmem:[#allocation3 + $0x58] sm:$0xff]
    %v100 = vld [vmem:[#allocation3 + $0x60] sm:$0xff]
    %v101 = vld [vmem:[#allocation3 + $0x68] sm:$0xff]
    %v102 = vld [vmem:[#allocation3 + $0x70] sm:$0xff]
    %v103 = vld [vmem:[#allocation3 + $0x78] sm:$0xff]
    %v104 = vld [vmem:[#allocation3 + $0x80] sm:$0xff]
    %v105 = vld [vmem:[#allocation3 + $0x88] sm:$0xff]
    %v106 = vld [vmem:[#allocation3 + $0x90] sm:$0xff]
    %v107 = vld [vmem:[#allocation3 + $0x98] sm:$0xff]
    %v108 = vld [vmem:[#allocation3 + $0xa0] sm:$0xff]
    %v109 = vld [vmem:[#allocation3 + $0xa8] sm:$0xff]
    %v110 = vld [vmem:[#allocation3 + $0xb0] sm:$0xff]
    %v111 = vld [vmem:[#allocation3 + $0xb8] sm:$0xff]
    %v112 = vld [vmem:[#allocation3 + $0xc0] sm:$0xff]
    %v113 = vld [vmem:[#allocation3 + $0xc8] sm:$0xff]
    %v114 = vld [vmem:[#allocation3 + $0xd0] sm:$0xff]
    %v115 = vld [vmem:[#allocation3 + $0xd8] sm:$0xff]
    %v116 = vld [vmem:[#allocation3 + $0xe0] sm:$0xff]
    %v117 = vld [vmem:[#allocation5] sm:$0xff]
    %v118 = vld [vmem:[#allocation5 + $0x8] sm:$0xff]
    %v119 = vld [vmem:[#allocation5 + $0x10] sm:$0xff]
    %v120 = vld [vmem:[#allocation5 + $0x18] sm:$0xff]
    %v121 = vld [vmem:[#allocation5 + $0x20] sm:$0xff]
    %v122 = vld [vmem:[#allocation5 + $0x28] sm:$0xff]
    %v123 = vld [vmem:[#allocation5 + $0x30] sm:$0xff]
    %v124 = vld [vmem:[#allocation5 + $0x38] sm:$0xff]
    %v125 = vld [vmem:[#allocation5 + $0x40] sm:$0xff]
    %v126 = vld [vmem:[#allocation5 + $0x48] sm:$0xff]
    %v127 = vld [vmem:[#allocation5 + $0x50] sm:$0xff]
    %v128 = vld [vmem:[#allocation5 + $0x58] sm:$0xff]
    %v129 = vld [vmem:[#allocation5 + $0x60] sm:$0xff]
    %v130 = vld [vmem:[#allocation5 + $0x68] sm:$0xff]
    %v131 = vld [vmem:[#allocation5 + $0x70] sm:$0xff]
    %v132 = vld [vmem:[#allocation5 + $0x78] sm:$0xff]
    %v133 = vld [vmem:[#allocation5 + $0x80] sm:$0xff]
    %v134 = vld [vmem:[#allocation5 + $0x88] sm:$0xff]
    %v135 = vld [vmem:[#allocation5 + $0x90] sm:$0xff]
    %v136 = vld [vmem:[#allocation5 + $0x98] sm:$0xff]
    %v137 = vld [vmem:[#allocation5 + $0xa0] sm:$0xff]
    %v138 = vld [vmem:[#allocation5 + $0xa8] sm:$0xff]
    %v139 = vld [vmem:[#allocation5 + $0xb0] sm:$0xff]
    %v140 = vld [vmem:[#allocation5 + $0xb8] sm:$0xff]
    %v141 = vld [vmem:[#allocation5 + $0xc0] sm:$0xff]
    %v142 = vld [vmem:[#allocation5 + $0xc8] sm:$0xff]
    %v143 = vld [vmem:[#allocation5 + $0xd0] sm:$0xff]
    %v144 = vld [vmem:[#allocation5 + $0xd8] sm:$0xff]
    %v145 = vld [vmem:[#allocation5 + $0xe0] sm:$0xff]
    %v146 = vld [vmem:[#allocation5 + $0xe8] sm:$0xff]
    %v147 = vld [vmem:[#allocation5 + $0xf0] sm:$0xff]
    %v148 = vld [vmem:[#allocation5 + $0xf8] sm:$0xff]
    %v149 = vld [vmem:[#allocation5 + $0x100] sm:$0xff]
    %v150 = vld [vmem:[#allocation5 + $0x108] sm:$0xff]
    %v151 = vld [vmem:[#allocation5 + $0x110] sm:$0xff]
    %v152 = vld [vmem:[#allocation5 + $0x118] sm:$0xff]
    %v153 = vld [vmem:[#allocation5 + $0x120] sm:$0xff]
    %v154 = vld [vmem:[#allocation5 + $0x128] sm:$0xff]
    %v155 = vld [vmem:[#allocation5 + $0x130] sm:$0xff]
    %v156 = vld [vmem:[#allocation5 + $0x138] sm:$0xff]
    %v157 = vld [vmem:[#allocation5 + $0x140] sm:$0xff]
    %v158 = vld [vmem:[#allocation5 + $0x148] sm:$0xff]
    %v159 = vld [vmem:[#allocation5 + $0x150] sm:$0xff]
    %v160 = vld [vmem:[#allocation5 + $0x158] sm:$0xff]
    %v161 = vld [vmem:[#allocation5 + $0x160] sm:$0xff]
    %v162 = vld [vmem:[#allocation5 + $0x168] sm:$0xff]
    %v163 = vld [vmem:[#allocation5 + $0x170] sm:$0xff]
    %v164 = vld [vmem:[#allocation5 + $0x178] sm:$0xff]
    %v165 = vld [vmem:[#allocation5 + $0x180] sm:$0xff]
    %v166 = vld [vmem:[#allocation5 + $0x188] sm:$0xff]
    %v167 = vld [vmem:[#allocation5 + $0x190] sm:$0xff]
    %v168 = vld [vmem:[#allocation5 + $0x198] sm:$0xff]
    %v169 = vld [vmem:[#allocation5 + $0x1a0] sm:$0xff]
    %v170 = vld [vmem:[#allocation5 + $0x1a8] sm:$0xff]
    %v171 = vld [vmem:[#allocation5 + $0x1b0] sm:$0xff]
    %v172 = vld [vmem:[#allocation5 + $0x1b8] sm:$0xff]
    %v173 = vld [vmem:[#allocation5 + $0x1c0] sm:$0xff]
    %v174 = vld [vmem:[#allocation5 + $0x1c8] sm:$0xff]
    %v175 = vld [vmem:[#allocation5 + $0x1d0] sm:$0xff]
    %v176 = vld [vmem:[#allocation5 + $0x1d8] sm:$0xff]
    %v177 = vld [vmem:[#allocation5 + $0x1e0] sm:$0xff]
    %v178 = vld [vmem:[#allocation5 + $0x1e8] sm:$0xff]
    %v179 = vld [vmem:[#allocation5 + $0x1f0] sm:$0xff]
    %v180 = vld [vmem:[#allocation5 + $0x1f8] sm:$0xff]
    %v181 = vld [vmem:[#allocation5 + $0x200] sm:$0xff]
    %v182 = vld [vmem:[#allocation5 + $0x208] sm:$0xff]
    %v183 = vld [vmem:[#allocation5 + $0x210] sm:$0xff]
    %v184 = vld [vmem:[#allocation5 + $0x218] sm:$0xff]
    %v185 = vld [vmem:[#allocation5 + $0x220] sm:$0xff]
    %v186 = vld [vmem:[#allocation5 + $0x228] sm:$0xff]
    %v187 = vld [vmem:[#allocation5 + $0x230] sm:$0xff]
    %v188 = vld [vmem:[#allocation5 + $0x238] sm:$0xff]
    %v189 = vld [vmem:[#allocation5 + $0x240] sm:$0xff]
    %v190 = vld [vmem:[#allocation5 + $0x248] sm:$0xff]
    %v191 = vld [vmem:[#allocation5 + $0x250] sm:$0xff]
    %v192 = vld [vmem:[#allocation5 + $0x258] sm:$0xff]
    %v193 = vld [vmem:[#allocation5 + $0x260] sm:$0xff]
    %v194 = vld [vmem:[#allocation5 + $0x268] sm:$0xff]
    %v195 = vld [vmem:[#allocation5 + $0x270] sm:$0xff]
    %v196 = vld [vmem:[#allocation5 + $0x278] sm:$0xff]
    %v197 = vld [vmem:[#allocation5 + $0x280] sm:$0xff]
    %v198 = vld [vmem:[#allocation5 + $0x288] sm:$0xff]
    %v199 = vld [vmem:[#allocation5 + $0x290] sm:$0xff]
    %v200 = vld [vmem:[#allocation5 + $0x298] sm:$0xff]
    %v201 = vld [vmem:[#allocation5 + $0x2a0] sm:$0xff]
    %v202 = vld [vmem:[#allocation5 + $0x2a8] sm:$0xff]
    %v203 = vld [vmem:[#allocation5 + $0x2b0] sm:$0xff]
    %v204 = vld [vmem:[#allocation5 + $0x2b8] sm:$0xff]
    %v205 = vld [vmem:[#allocation5 + $0x2c0] sm:$0xff]
    %v206 = vld [vmem:[#allocation5 + $0x2c8] sm:$0xff]
    %v207 = vld [vmem:[#allocation5 + $0x2d0] sm:$0xff]
    %v208 = vld [vmem:[#allocation5 + $0x2d8] sm:$0xff]
    %v209 = vld [vmem:[#allocation5 + $0x2e0] sm:$0xff]
    %v210 = vld [vmem:[#allocation5 + $0x2e8] sm:$0xff]
    %v211 = vld [vmem:[#allocation5 + $0x2f0] sm:$0xff]
    %v212 = vld [vmem:[#allocation5 + $0x2f8] sm:$0xff]
    %v213 = vld [vmem:[#allocation5 + $0x300] sm:$0xff]
    %v214 = vld [vmem:[#allocation5 + $0x308] sm:$0xff]
    %v215 = vld [vmem:[#allocation5 + $0x310] sm:$0xff]
    %v216 = vld [vmem:[#allocation5 + $0x318] sm:$0xff]
    %v217 = vld [vmem:[#allocation5 + $0x320] sm:$0xff]
    %v218 = vld [vmem:[#allocation5 + $0x328] sm:$0xff]
    %v219 = vld [vmem:[#allocation5 + $0x330] sm:$0xff]
    %v220 = vld [vmem:[#allocation5 + $0x338] sm:$0xff]
    %v221 = vld [vmem:[#allocation5 + $0x340] sm:$0xff]
    %v222 = vld [vmem:[#allocation5 + $0x348] sm:$0xff]
    %v223 = vld [vmem:[#allocation5 + $0x350] sm:$0xff]
    %v224 = vld [vmem:[#allocation5 + $0x358] sm:$0xff]
    %v225 = vld [vmem:[#allocation5 + $0x360] sm:$0xff]
    %v226 = vld [vmem:[#allocation5 + $0x368] sm:$0xff]
    %v227 = vld [vmem:[#allocation5 + $0x370] sm:$0xff]
    %v228 = vld [vmem:[#allocation5 + $0x378] sm:$0xff]
    %v229 = vld [vmem:[#allocation5 + $0x380] sm:$0xff]
    %v230 = vld [vmem:[#allocation5 + $0x388] sm:$0xff]
    %v231 = vld [vmem:[#allocation5 + $0x390] sm:$0xff]
    %v232 = vld [vmem:[#allocation5 + $0x398] sm:$0xff]
    %v233 = vld [vmem:[#allocation5 + $0x3a0] sm:$0xff]
    %v234 = vld [vmem:[#allocation5 + $0x3a8] sm:$0xff]
    %v235 = vld [vmem:[#allocation5 + $0x3b0] sm:$0xff]
    %v236 = vld [vmem:[#allocation5 + $0x3b8] sm:$0xff]
    %v237 = vld [vmem:[#allocation5 + $0x3c0] sm:$0xff]
    %v238 = vld [vmem:[#allocation5 + $0x3c8] sm:$0xff]
    %v239 = vld [vmem:[#allocation5 + $0x3d0] sm:$0xff]
    %v240 = vld [vmem:[#allocation5 + $0x3d8] sm:$0xff]
    %v241 = vld [vmem:[#allocation5 + $0x3e0] sm:$0xff]
    %v242 = vld [vmem:[#allocation5 + $0x3e8] sm:$0xff]
    %v243 = vld [vmem:[#allocation5 + $0x3f0] sm:$0xff]
    %v244 = vld [vmem:[#allocation5 + $0x3f8] sm:$0xff]
    %v245 = vld [vmem:[#allocation5 + $0x400] sm:$0xff]
    %v246 = vld [vmem:[#allocation5 + $0x408] sm:$0xff]
    %v247 = vld [vmem:[#allocation5 + $0x410] sm:$0xff]
    %v248 = vld [vmem:[#allocation5 + $0x418] sm:$0xff]
    %v249 = vld [vmem:[#allocation5 + $0x420] sm:$0xff]
    %v250 = vld [vmem:[#allocation5 + $0x428] sm:$0xff]
    %v251 = vld [vmem:[#allocation5 + $0x430] sm:$0xff]
    %v252 = vld [vmem:[#allocation5 + $0x438] sm:$0xff]
    %v253 = vld [vmem:[#allocation5 + $0x440] sm:$0xff]
    %v254 = vld [vmem:[#allocation5 + $0x448] sm:$0xff]
    %v255 = vld [vmem:[#allocation5 + $0x450] sm:$0xff]
    %v256 = vld [vmem:[#allocation5 + $0x458] sm:$0xff]
    %v257 = vld [vmem:[#allocation5 + $0x460] sm:$0xff]
    %v258 = vld [vmem:[#allocation5 + $0x468] sm:$0xff]
    %v259 = vld [vmem:[#allocation5 + $0x470] sm:$0xff]
    %v260 = vld [vmem:[#allocation5 + $0x478] sm:$0xff]
    %v261 = vld [vmem:[#allocation5 + $0x480] sm:$0xff]
    %v262 = vld [vmem:[#allocation5 + $0x488] sm:$0xff]
    %v263 = vld [vmem:[#allocation5 + $0x490] sm:$0xff]
    %v264 = vld [vmem:[#allocation5 + $0x498] sm:$0xff]
    %v265 = vld [vmem:[#allocation5 + $0x4a0] sm:$0xff]
    %v266 = vld [vmem:[#allocation5 + $0x4a8] sm:$0xff]
    %v267 = vld [vmem:[#allocation5 + $0x4b0] sm:$0xff]
    %v268 = vld [vmem:[#allocation5 + $0x4b8] sm:$0xff]
    %v269 = vld [vmem:[#allocation5 + $0x4c0] sm:$0xff]
    %v270 = vld [vmem:[#allocation5 + $0x4c8] sm:$0xff]
    %v271 = vld [vmem:[#allocation5 + $0x4d0] sm:$0xff]
    %v272 = vld [vmem:[#allocation5 + $0x4d8] sm:$0xff]
    %v273 = vld [vmem:[#allocation5 + $0x4e0] sm:$0xff]
    %v274 = vld [vmem:[#allocation5 + $0x4e8] sm:$0xff]
    %v275 = vld [vmem:[#allocation5 + $0x4f0] sm:$0xff]
    %v276 = vld [vmem:[#allocation5 + $0x4f8] sm:$0xff]
    %v277 = vld [vmem:[#allocation5 + $0x500] sm:$0xff]
    %v278 = vld [vmem:[#allocation5 + $0x508] sm:$0xff]
    %v279 = vld [vmem:[#allocation5 + $0x510] sm:$0xff]
    %v280 = vld [vmem:[#allocation5 + $0x518] sm:$0xff]
    %v281 = vld [vmem:[#allocation5 + $0x520] sm:$0xff]
    %v282 = vld [vmem:[#allocation5 + $0x528] sm:$0xff]
    %v283 = vld [vmem:[#allocation5 + $0x530] sm:$0xff]
    %v284 = vld [vmem:[#allocation5 + $0x538] sm:$0xff]
    %v285 = vld [vmem:[#allocation5 + $0x540] sm:$0xff]
    %v286 = vld [vmem:[#allocation5 + $0x548] sm:$0xff]
    %v287 = vld [vmem:[#allocation5 + $0x550] sm:$0xff]
    %v288 = vld [vmem:[#allocation5 + $0x558] sm:$0xff]
    %v289 = vld [vmem:[#allocation5 + $0x560] sm:$0xff]
    %v290 = vld [vmem:[#allocation5 + $0x568] sm:$0xff]
    %v291 = vld [vmem:[#allocation5 + $0x570] sm:$0xff]
    %v292 = vld [vmem:[#allocation5 + $0x578] sm:$0xff]
    %v293 = vld [vmem:[#allocation5 + $0x580] sm:$0xff]
    %v294 = vld [vmem:[#allocation5 + $0x588] sm:$0xff]
    %v295 = vld [vmem:[#allocation5 + $0x590] sm:$0xff]
    %v296 = vld [vmem:[#allocation5 + $0x598] sm:$0xff]
    %v297 = vld [vmem:[#allocation5 + $0x5a0] sm:$0xff]
    %v298 = vld [vmem:[#allocation5 + $0x5a8] sm:$0xff]
    %v299 = vld [vmem:[#allocation5 + $0x5b0] sm:$0xff]
    %v300 = vld [vmem:[#allocation5 + $0x5b8] sm:$0xff]
    %v301 = vld [vmem:[#allocation5 + $0x5c0] sm:$0xff]
    %v302 = vld [vmem:[#allocation5 + $0x5c8] sm:$0xff]
    %v303 = vld [vmem:[#allocation5 + $0x5d0] sm:$0xff]
    %v304 = vld [vmem:[#allocation5 + $0x5d8] sm:$0xff]
    %v305 = vld [vmem:[#allocation5 + $0x5e0] sm:$0xff]
    %v306 = vld [vmem:[#allocation5 + $0x5e8] sm:$0xff]
    %v307 = vld [vmem:[#allocation5 + $0x5f0] sm:$0xff]
    %v308 = vld [vmem:[#allocation5 + $0x5f8] sm:$0xff]
    %v309 = vld [vmem:[#allocation5 + $0x600] sm:$0xff]
    %v310 = vld [vmem:[#allocation5 + $0x608] sm:$0xff]
    %v311 = vld [vmem:[#allocation5 + $0x610] sm:$0xff]
    %v312 = vld [vmem:[#allocation5 + $0x618] sm:$0xff]
    %v313 = vld [vmem:[#allocation5 + $0x620] sm:$0xff]
    %v314 = vld [vmem:[#allocation5 + $0x628] sm:$0xff]
    %v315 = vld [vmem:[#allocation5 + $0x630] sm:$0xff]
    %v316 = vld [vmem:[#allocation5 + $0x638] sm:$0xff]
    %v317 = vld [vmem:[#allocation5 + $0x640] sm:$0xff]
    %v318 = vld [vmem:[#allocation5 + $0x648] sm:$0xff]
    %v319 = vld [vmem:[#allocation5 + $0x650] sm:$0xff]
    %v320 = vld [vmem:[#allocation5 + $0x658] sm:$0xff]
    %v321 = vld [vmem:[#allocation5 + $0x660] sm:$0xff]
    %v322 = vld [vmem:[#allocation5 + $0x668] sm:$0xff]
    %v323 = vld [vmem:[#allocation5 + $0x670] sm:$0xff]
    %v324 = vld [vmem:[#allocation5 + $0x678] sm:$0xff]
    %v325 = vld [vmem:[#allocation5 + $0x680] sm:$0xff]
    %v326 = vld [vmem:[#allocation5 + $0x688] sm:$0xff]
    %v327 = vld [vmem:[#allocation5 + $0x690] sm:$0xff]
    %v328 = vld [vmem:[#allocation5 + $0x698] sm:$0xff]
    %v329 = vld [vmem:[#allocation5 + $0x6a0] sm:$0xff]
    %v330 = vld [vmem:[#allocation5 + $0x6a8] sm:$0xff]
    %v331 = vld [vmem:[#allocation5 + $0x6b0] sm:$0xff]
    %v332 = vld [vmem:[#allocation5 + $0x6b8] sm:$0xff]
    %v333 = vld [vmem:[#allocation5 + $0x6c0] sm:$0xff]
    %v334 = vld [vmem:[#allocation5 + $0x6c8] sm:$0xff]
    %v335 = vld [vmem:[#allocation5 + $0x6d0] sm:$0xff]
    %v336 = vld [vmem:[#allocation5 + $0x6d8] sm:$0xff]
    %v337 = vld [vmem:[#allocation5 + $0x6e0] sm:$0xff]
    %v338 = vld [vmem:[#allocation5 + $0x6e8] sm:$0xff]
    %v339 = vld [vmem:[#allocation5 + $0x6f0] sm:$0xff]
    %v340 = vld [vmem:[#allocation5 + $0x6f8] sm:$0xff]
    %v341 = vld [vmem:[#allocation5 + $0x700] sm:$0xff]
    %v342 = vld [vmem:[#allocation5 + $0x708] sm:$0xff]
    %v343 = vld [vmem:[#allocation5 + $0x710] sm:$0xff]
    %v344 = vld [vmem:[#allocation5 + $0x718] sm:$0xff]
    %v345 = vld [vmem:[#allocation5 + $0x720] sm:$0xff]
    %v346 = vld [vmem:[#allocation5 + $0x728] sm:$0xff]
    %v347 = vld [vmem:[#allocation5 + $0x730] sm:$0xff]
    %v348 = vld [vmem:[#allocation5 + $0x738] sm:$0xff]
    %v349 = vld [vmem:[#allocation5 + $0x740] sm:$0xff]
    %v350 = vld [vmem:[#allocation5 + $0x748] sm:$0xff]
    %v351 = vld [vmem:[#allocation5 + $0x750] sm:$0xff]
    %v352 = vld [vmem:[#allocation5 + $0x758] sm:$0xff]
    %v353 = vld [vmem:[#allocation5 + $0x760] sm:$0xff]
    %v354 = vld [vmem:[#allocation5 + $0x768] sm:$0xff]
    %v355 = vld [vmem:[#allocation5 + $0x770] sm:$0xff]
    %v356 = vld [vmem:[#allocation5 + $0x778] sm:$0xff]
    %v357 = vld [vmem:[#allocation5 + $0x780] sm:$0xff]
    %v358 = vld [vmem:[#allocation5 + $0x788] sm:$0xff]
    %v359 = vld [vmem:[#allocation5 + $0x790] sm:$0xff]
    %v360 = vld [vmem:[#allocation5 + $0x798] sm:$0xff]
    %v361 = vld [vmem:[#allocation5 + $0x7a0] sm:$0xff]
    %v362 = vld [vmem:[#allocation5 + $0x7a8] sm:$0xff]
    %v363 = vld [vmem:[#allocation5 + $0x7b0] sm:$0xff]
    %v364 = vld [vmem:[#allocation5 + $0x7b8] sm:$0xff]
    %v365 = vld [vmem:[#allocation5 + $0x7c0] sm:$0xff]
    %v366 = vld [vmem:[#allocation5 + $0x7c8] sm:$0xff]
    %v367 = vld [vmem:[#allocation5 + $0x7d0] sm:$0xff]
    %v368 = vld [vmem:[#allocation5 + $0x7d8] sm:$0xff]
    %v369 = vld [vmem:[#allocation5 + $0x7e0] sm:$0xff]
    %v370 = vld [vmem:[#allocation5 + $0x7e8] sm:$0xff]
    %v371 = vld [vmem:[#allocation5 + $0x7f0] sm:$0xff]
    %v372 = vld [vmem:[#allocation5 + $0x7f8] sm:$0xff]
    %v373 = vld [vmem:[#allocation5 + $0x800] sm:$0xff]
    %v374 = vld [vmem:[#allocation5 + $0x808] sm:$0xff]
    %v375 = vld [vmem:[#allocation5 + $0x810] sm:$0xff]
    %v376 = vld [vmem:[#allocation5 + $0x818] sm:$0xff]
    %v377 = vld [vmem:[#allocation5 + $0x820] sm:$0xff]
    %v378 = vld [vmem:[#allocation5 + $0x828] sm:$0xff]
    %v379 = vld [vmem:[#allocation5 + $0x830] sm:$0xff]
    %v380 = vld [vmem:[#allocation5 + $0x838] sm:$0xff]
    %v381 = vld [vmem:[#allocation5 + $0x840] sm:$0xff]
    %v382 = vld [vmem:[#allocation5 + $0x848] sm:$0xff]
    %v383 = vld [vmem:[#allocation5 + $0x850] sm:$0xff]
    %v384 = vld [vmem:[#allocation5 + $0x858] sm:$0xff]
    %v385 = vld [vmem:[#allocation5 + $0x860] sm:$0xff]
    %v386 = vld [vmem:[#allocation5 + $0x868] sm:$0xff]
    %v387 = vld [vmem:[#allocation5 + $0x870] sm:$0xff]
    %v388 = vld [vmem:[#allocation5 + $0x878] sm:$0xff]
    %v389 = vld [vmem:[#allocation5 + $0x880] sm:$0xff]
    %v390 = vld [vmem:[#allocation5 + $0x888] sm:$0xff]
    %v391 = vld [vmem:[#allocation5 + $0x890] sm:$0xff]
    %v392 = vld [vmem:[#allocation5 + $0x898] sm:$0xff]
    %v393 = vld [vmem:[#allocation5 + $0x8a0] sm:$0xff]
    %v394 = vld [vmem:[#allocation5 + $0x8a8] sm:$0xff]
    %v395 = vld [vmem:[#allocation5 + $0x8b0] sm:$0xff]
    %v396 = vld [vmem:[#allocation5 + $0x8b8] sm:$0xff]
    %v397 = vld [vmem:[#allocation5 + $0x8c0] sm:$0xff]
    %v398 = vld [vmem:[#allocation5 + $0x8c8] sm:$0xff]
    %v399 = vld [vmem:[#allocation5 + $0x8d0] sm:$0xff]
    %v400 = vld [vmem:[#allocation5 + $0x8d8] sm:$0xff]
    %v401 = vld [vmem:[#allocation5 + $0x8e0] sm:$0xff]
    %v402 = vld [vmem:[#allocation5 + $0x8e8] sm:$0xff]
    %v403 = vld [vmem:[#allocation5 + $0x8f0] sm:$0xff]
    %v404 = vld [vmem:[#allocation5 + $0x8f8] sm:$0xff]
    %v405 = vld [vmem:[#allocation5 + $0x900] sm:$0xff]
    %v406 = vld [vmem:[#allocation5 + $0x908] sm:$0xff]
    %v407 = vld [vmem:[#allocation5 + $0x910] sm:$0xff]
    %v408 = vld [vmem:[#allocation5 + $0x918] sm:$0xff]
    %v409 = vld [vmem:[#allocation5 + $0x920] sm:$0xff]
    %v410 = vld [vmem:[#allocation5 + $0x928] sm:$0xff]
    %v411 = vld [vmem:[#allocation5 + $0x930] sm:$0xff]
    %v412 = vld [vmem:[#allocation5 + $0x938] sm:$0xff]
    %v413 = vld [vmem:[#allocation5 + $0x940] sm:$0xff]
    %v414 = vld [vmem:[#allocation5 + $0x948] sm:$0xff]
    %v415 = vld [vmem:[#allocation5 + $0x950] sm:$0xff]
    %v416 = vld [vmem:[#allocation5 + $0x958] sm:$0xff]
    %v417 = vld [vmem:[#allocation5 + $0x960] sm:$0xff]
    %v418 = vld [vmem:[#allocation5 + $0x968] sm:$0xff]
    %v419 = vld [vmem:[#allocation5 + $0x970] sm:$0xff]
    %v420 = vld [vmem:[#allocation5 + $0x978] sm:$0xff]
    %v421 = vld [vmem:[#allocation5 + $0x980] sm:$0xff]
    %v422 = vld [vmem:[#allocation5 + $0x988] sm:$0xff]
    %v423 = vld [vmem:[#allocation5 + $0x990] sm:$0xff]
    %v424 = vld [vmem:[#allocation5 + $0x998] sm:$0xff]
    %v425 = vld [vmem:[#allocation5 + $0x9a0] sm:$0xff]
    %v426 = vld [vmem:[#allocation5 + $0x9a8] sm:$0xff]
    %v427 = vld [vmem:[#allocation5 + $0x9b0] sm:$0xff]
    %v428 = vld [vmem:[#allocation5 + $0x9b8] sm:$0xff]
    %v429 = vld [vmem:[#allocation5 + $0x9c0] sm:$0xff]
    %v430 = vld [vmem:[#allocation5 + $0x9c8] sm:$0xff]
    %v431 = vld [vmem:[#allocation5 + $0x9d0] sm:$0xff]
    %v432 = vld [vmem:[#allocation5 + $0x9d8] sm:$0xff]
    %v433 = vld [vmem:[#allocation5 + $0x9e0] sm:$0xff]
    %v434 = vld [vmem:[#allocation5 + $0x9e8] sm:$0xff]
    %v435 = vld [vmem:[#allocation5 + $0x9f0] sm:$0xff]
    %v436 = vld [vmem:[#allocation5 + $0x9f8] sm:$0xff]
    %v437 = vld [vmem:[#allocation5 + $0xa00] sm:$0xff]
    %v438 = vld [vmem:[#allocation5 + $0xa08] sm:$0xff]
    %v439 = vld [vmem:[#allocation5 + $0xa10] sm:$0xff]
    %v440 = vld [vmem:[#allocation5 + $0xa18] sm:$0xff]
    %v441 = vld [vmem:[#allocation5 + $0xa20] sm:$0xff]
    %v442 = vld [vmem:[#allocation5 + $0xa28] sm:$0xff]
    %v443 = vld [vmem:[#allocation5 + $0xa30] sm:$0xff]
    %v444 = vld [vmem:[#allocation5 + $0xa38] sm:$0xff]
    %v445 = vld [vmem:[#allocation5 + $0xa40] sm:$0xff]
    %v446 = vld [vmem:[#allocation5 + $0xa48] sm:$0xff]
    %v447 = vld [vmem:[#allocation5 + $0xa50] sm:$0xff]
    %v448 = vld [vmem:[#allocation5 + $0xa58] sm:$0xff]
    %v449 = vld [vmem:[#allocation5 + $0xa60] sm:$0xff]
    %v450 = vld [vmem:[#allocation5 + $0xa68] sm:$0xff]
    %v451 = vld [vmem:[#allocation5 + $0xa70] sm:$0xff]
    %v452 = vld [vmem:[#allocation5 + $0xa78] sm:$0xff]
    %v453 = vld [vmem:[#allocation5 + $0xa80] sm:$0xff]
    %v454 = vld [vmem:[#allocation5 + $0xa88] sm:$0xff]
    %v455 = vld [vmem:[#allocation5 + $0xa90] sm:$0xff]
    %v456 = vld [vmem:[#allocation5 + $0xa98] sm:$0xff]
    %v457 = vld [vmem:[#allocation5 + $0xaa0] sm:$0xff]
    %v458 = vld [vmem:[#allocation5 + $0xaa8] sm:$0xff]
    %v459 = vld [vmem:[#allocation5 + $0xab0] sm:$0xff]
    %v460 = vld [vmem:[#allocation5 + $0xab8] sm:$0xff]
    %v461 = vld [vmem:[#allocation5 + $0xac0] sm:$0xff]
    %v462 = vld [vmem:[#allocation5 + $0xac8] sm:$0xff]
    %v463 = vld [vmem:[#allocation5 + $0xad0] sm:$0xff]
    %v464 = vld [vmem:[#allocation5 + $0xad8] sm:$0xff]
    %v465 = vld [vmem:[#allocation5 + $0xae0] sm:$0xff]
    %v466 = vld [vmem:[#allocation5 + $0xae8] sm:$0xff]
    %v467 = vld [vmem:[#allocation5 + $0xaf0] sm:$0xff]
    %v468 = vld [vmem:[#allocation5 + $0xaf8] sm:$0xff]
    %v469 = vld [vmem:[#allocation5 + $0xb00] sm:$0xff]
    %v470 = vld [vmem:[#allocation5 + $0xb08] sm:$0xff]
    %v471 = vld [vmem:[#allocation5 + $0xb10] sm:$0xff]
    %v472 = vld [vmem:[#allocation5 + $0xb18] sm:$0xff]
    %v473 = vld [vmem:[#allocation5 + $0xb20] sm:$0xff]
    %v474 = vld [vmem:[#allocation5 + $0xb28] sm:$0xff]
    %v475 = vld [vmem:[#allocation5 + $0xb30] sm:$0xff]
    %v476 = vld [vmem:[#allocation5 + $0xb38] sm:$0xff]
    %v477 = vld [vmem:[#allocation5 + $0xb40] sm:$0xff]
    %v478 = vld [vmem:[#allocation5 + $0xb48] sm:$0xff]
    %v479 = vld [vmem:[#allocation5 + $0xb50] sm:$0xff]
    %v480 = vld [vmem:[#allocation5 + $0xb58] sm:$0xff]
    %v481 = vld [vmem:[#allocation5 + $0xb60] sm:$0xff]
    %v482 = vld [vmem:[#allocation5 + $0xb68] sm:$0xff]
    %v483 = vld [vmem:[#allocation5 + $0xb70] sm:$0xff]
    %v484 = vld [vmem:[#allocation5 + $0xb78] sm:$0xff]
    %v485 = vld [vmem:[#allocation5 + $0xb80] sm:$0xff]
    %v486 = vld [vmem:[#allocation5 + $0xb88] sm:$0xff]
    %v487 = vld [vmem:[#allocation5 + $0xb90] sm:$0xff]
    %v488 = vld [vmem:[#allocation5 + $0xb98] sm:$0xff]
    %v489 = vld [vmem:[#allocation5 + $0xba0] sm:$0xff]
    %v490 = vld [vmem:[#allocation5 + $0xba8] sm:$0xff]
    %v491 = vld [vmem:[#allocation5 + $0xbb0] sm:$0xff]
    %v492 = vld [vmem:[#allocation5 + $0xbb8] sm:$0xff]
    %v493 = vld [vmem:[#allocation5 + $0xbc0] sm:$0xff]
    %v494 = vld [vmem:[#allocation5 + $0xbc8] sm:$0xff]
    %v495 = vld [vmem:[#allocation5 + $0xbd0] sm:$0xff]
    %v496 = vld [vmem:[#allocation5 + $0xbd8] sm:$0xff]
    %v497 = vld [vmem:[#allocation5 + $0xbe0] sm:$0xff]
    %v498 = vld [vmem:[#allocation5 + $0xbe8] sm:$0xff]
    %v499 = vld [vmem:[#allocation5 + $0xbf0] sm:$0xff]
    %v500 = vld [vmem:[#allocation5 + $0xbf8] sm:$0xff]
    %v501 = vld [vmem:[#allocation5 + $0xc00] sm:$0xff]
    %v502 = vld [vmem:[#allocation5 + $0xc08] sm:$0xff]
    %v503 = vld [vmem:[#allocation5 + $0xc10] sm:$0xff]
    %v504 = vld [vmem:[#allocation5 + $0xc18] sm:$0xff]
    %v505 = vld [vmem:[#allocation5 + $0xc20] sm:$0xff]
    %v506 = vld [vmem:[#allocation5 + $0xc28] sm:$0xff]
    %v507 = vld [vmem:[#allocation5 + $0xc30] sm:$0xff]
    %v508 = vld [vmem:[#allocation5 + $0xc38] sm:$0xff]
    %v509 = vld [vmem:[#allocation5 + $0xc40] sm:$0xff]
    %v510 = vld [vmem:[#allocation5 + $0xc48] sm:$0xff]
    %v511 = vld [vmem:[#allocation5 + $0xc50] sm:$0xff]
    %v512 = vld [vmem:[#allocation5 + $0xc58] sm:$0xff]
    %v513 = vld [vmem:[#allocation5 + $0xc60] sm:$0xff]
    %v514 = vld [vmem:[#allocation5 + $0xc68] sm:$0xff]
    %v515 = vld [vmem:[#allocation5 + $0xc70] sm:$0xff]
    %v516 = vld [vmem:[#allocation5 + $0xc78] sm:$0xff]
    %v517 = vld [vmem:[#allocation5 + $0xc80] sm:$0xff]
    %v518 = vld [vmem:[#allocation5 + $0xc88] sm:$0xff]
    %v519 = vld [vmem:[#allocation5 + $0xc90] sm:$0xff]
    %v520 = vld [vmem:[#allocation5 + $0xc98] sm:$0xff]
    %v521 = vld [vmem:[#allocation5 + $0xca0] sm:$0xff]
    %v522 = vld [vmem:[#allocation5 + $0xca8] sm:$0xff]
    %v523 = vld [vmem:[#allocation5 + $0xcb0] sm:$0xff]
    %v524 = vld [vmem:[#allocation5 + $0xcb8] sm:$0xff]
    %v525 = vld [vmem:[#allocation5 + $0xcc0] sm:$0xff]
    %v526 = vld [vmem:[#allocation5 + $0xcc8] sm:$0xff]
    %v527 = vld [vmem:[#allocation5 + $0xcd0] sm:$0xff]
    %v528 = vld [vmem:[#allocation5 + $0xcd8] sm:$0xff]
    %v529 = vld [vmem:[#allocation5 + $0xce0] sm:$0xff]
    %v530 = vld [vmem:[#allocation5 + $0xce8] sm:$0xff]
    %v531 = vld [vmem:[#allocation5 + $0xcf0] sm:$0xff]
    %v532 = vld [vmem:[#allocation5 + $0xcf8] sm:$0xff]
    %v533 = vld [vmem:[#allocation5 + $0xd00] sm:$0xff]
    %v534 = vld [vmem:[#allocation5 + $0xd08] sm:$0xff]
    %v535 = vld [vmem:[#allocation5 + $0xd10] sm:$0xff]
    %v536 = vld [vmem:[#allocation5 + $0xd18] sm:$0xff]
    %v537 = vld [vmem:[#allocation5 + $0xd20] sm:$0xff]
    %v538 = vld [vmem:[#allocation5 + $0xd28] sm:$0xff]
    %v539 = vld [vmem:[#allocation5 + $0xd30] sm:$0xff]
    %v540 = vld [vmem:[#allocation5 + $0xd38] sm:$0xff]
    %v541 = vld [vmem:[#allocation5 + $0xd40] sm:$0xff]
    %v542 = vld [vmem:[#allocation5 + $0xd48] sm:$0xff]
    %v543 = vld [vmem:[#allocation5 + $0xd50] sm:$0xff]
    %v544 = vld [vmem:[#allocation5 + $0xd58] sm:$0xff]
    %v545 = vld [vmem:[#allocation5 + $0xd60] sm:$0xff]
    %v546 = vld [vmem:[#allocation5 + $0xd68] sm:$0xff]
    %v547 = vld [vmem:[#allocation5 + $0xd70] sm:$0xff]
    %v548 = vld [vmem:[#allocation5 + $0xd78] sm:$0xff]
    %v549 = vld [vmem:[#allocation5 + $0xd80] sm:$0xff]
    %v550 = vld [vmem:[#allocation5 + $0xd88] sm:$0xff]
    %v551 = vld [vmem:[#allocation5 + $0xd90] sm:$0xff]
    %v552 = vld [vmem:[#allocation5 + $0xd98] sm:$0xff]
    %v553 = vld [vmem:[#allocation5 + $0xda0] sm:$0xff]
    %v554 = vld [vmem:[#allocation5 + $0xda8] sm:$0xff]
    %v555 = vld [vmem:[#allocation5 + $0xdb0] sm:$0xff]
    %v556 = vld [vmem:[#allocation5 + $0xdb8] sm:$0xff]
    %v557 = vld [vmem:[#allocation5 + $0xdc0] sm:$0xff]
    %v558 = vld [vmem:[#allocation5 + $0xdc8] sm:$0xff]
    %v559 = vld [vmem:[#allocation5 + $0xdd0] sm:$0xff]
    %v560 = vld [vmem:[#allocation5 + $0xdd8] sm:$0xff]
    %v561 = vld [vmem:[#allocation5 + $0xde0] sm:$0xff]
    %v562 = vld [vmem:[#allocation5 + $0xde8] sm:$0xff]
    %v563 = vld [vmem:[#allocation5 + $0xdf0] sm:$0xff]
    %v564 = vld [vmem:[#allocation5 + $0xdf8] sm:$0xff]
    %v565 = vld [vmem:[#allocation5 + $0xe00] sm:$0xff]
    %v566 = vld [vmem:[#allocation5 + $0xe08] sm:$0xff]
    %v567 = vld [vmem:[#allocation7] sm:$0x1]
    %v569 = vlaneseq
    %v570 = vshrl.u32 %v569, 7
    %v571 = vsub.s32 0, %v570
    %v572 = vrot.slane %v567, %v571
    %vm574 = vcmask 130048
    %v576 = vsel %vm574, %v116, 0
    %578 = vmatprep.subr.mxu0 0.0
    %579 = vmatpush1.msra.mxu0 %v117
    %580 = vmatprep.subr.mxu0 0.0
    %581 = vmatpush1.msra.mxu0 %v118
    %582 = vmatprep.subr.mxu0 0.0
    %583 = vmatpush1.msra.mxu0 %v119
    %584 = vmatprep.subr.mxu0 0.0
    %585 = vmatpush1.msra.mxu0 %v120
    %586 = vmatprep.subr.mxu0 0.0
    %587 = vmatpush1.msra.mxu0 %v121
    %588 = vmatprep.subr.mxu0 0.0
    %589 = vmatpush1.msra.mxu0 %v122
    %590 = vmatprep.subr.mxu0 0.0
    %591 = vmatpush1.msra.mxu0 %v123
    %592 = vmatprep.subr.mxu0 0.0
    %593 = vmatpush1.msra.mxu0 %v124
    %594 = vmatprep.subr.mxu0 0.0
    %595 = vmatpush1.msra.mxu0 %v125
    %596 = vmatprep.subr.mxu0 0.0
    %597 = vmatpush1.msra.mxu0 %v126
    %598 = vmatprep.subr.mxu0 0.0
    %599 = vmatpush1.msra.mxu0 %v127
    %600 = vmatprep.subr.mxu0 0.0
    %601 = vmatpush1.msra.mxu0 %v128
    %602 = vmatprep.subr.mxu0 0.0
    %603 = vmatpush1.msra.mxu0 %v129
    %604 = vmatprep.subr.mxu0 0.0
    %605 = vmatpush1.msra.mxu0 %v130
    %606 = vmatprep.subr.mxu0 0.0
    %607 = vmatpush1.msra.mxu0 %v131
    %608 = vmatprep.subr.mxu0 0.0
    %609 = vmatpush1.msra.mxu0 %v132
    %610 = vmatprep.subr.mxu0 0.0
    %611 = vmatpush1.msra.mxu0 %v133
    %612 = vmatprep.subr.mxu0 0.0
    %613 = vmatpush1.msra.mxu0 %v134
    %614 = vmatprep.subr.mxu0 0.0
    %615 = vmatpush1.msra.mxu0 %v135
    %616 = vmatprep.subr.mxu0 0.0
    %617 = vmatpush1.msra.mxu0 %v136
    %618 = vmatprep.subr.mxu0 0.0
    %619 = vmatpush1.msra.mxu0 %v137
    %620 = vmatprep.subr.mxu0 0.0
    %621 = vmatpush1.msra.mxu0 %v138
    %622 = vmatprep.subr.mxu0 0.0
    %623 = vmatpush1.msra.mxu0 %v139
    %624 = vmatprep.subr.mxu0 0.0
    %625 = vmatpush1.msra.mxu0 %v140
    %626 = vmatprep.subr.mxu0 0.0
    %627 = vmatpush1.msra.mxu0 %v141
    %628 = vmatprep.subr.mxu0 0.0
    %629 = vmatpush1.msra.mxu0 %v142
    %630 = vmatprep.subr.mxu0 0.0
    %631 = vmatpush1.msra.mxu0 %v143
    %632 = vmatprep.subr.mxu0 0.0
    %633 = vmatpush1.msra.mxu0 %v144
    %634 = vmatprep.subr.mxu0 0.0
    %635 = vmatpush1.msra.mxu0 %v145
    %636 = vmatprep.subr.mxu0 0.0
    %637 = vmatpush1.msra.mxu0 %v146
    %638 = vmatprep.subr.mxu0 0.0
    %639 = vmatpush1.msra.mxu0 %v147
    %640 = vmatprep.subr.mxu0 0.0
    %641 = vmatpush1.msra.mxu0 %v148
    %642 = vmatprep.mubr.f32.mxu0 %v89
    %643 = vmatmul.mubr.f32.gmra.mrb[0].mxu0 %v88
    %v644 = vpop.f32.mrb[0].mxu0
    %v645 = vadd.f32 %v572, %v644
    %v646 = vpop.f32.mrb[0].mxu0
    %647 = vdwg.mxu0
    %648 = vmatprep.subr.mxu0 0.0
    %649 = vmatpush1.msra.mxu0 %v149
    %650 = vmatprep.subr.mxu0 0.0
    %651 = vmatpush1.msra.mxu0 %v150
    %652 = vmatprep.subr.mxu0 0.0
    %653 = vmatpush1.msra.mxu0 %v151
    %654 = vmatprep.subr.mxu0 0.0
    %655 = vmatpush1.msra.mxu0 %v152
    %656 = vmatprep.subr.mxu0 0.0
    %657 = vmatpush1.msra.mxu0 %v153
    %658 = vmatprep.subr.mxu0 0.0
    %659 = vmatpush1.msra.mxu0 %v154
    %660 = vmatprep.subr.mxu0 0.0
    %661 = vmatpush1.msra.mxu0 %v155
    %662 = vmatprep.subr.mxu0 0.0
    %663 = vmatpush1.msra.mxu0 %v156
    %664 = vmatprep.subr.mxu0 0.0
    %665 = vmatpush1.msra.mxu0 %v157
    %666 = vmatprep.subr.mxu0 0.0
    %667 = vmatpush1.msra.mxu0 %v158
    %668 = vmatprep.subr.mxu0 0.0
    %669 = vmatpush1.msra.mxu0 %v159
    %670 = vmatprep.subr.mxu0 0.0
    %671 = vmatpush1.msra.mxu0 %v160
    %672 = vmatprep.subr.mxu0 0.0
    %673 = vmatpush1.msra.mxu0 %v161
    %674 = vmatprep.subr.mxu0 0.0
    %675 = vmatpush1.msra.mxu0 %v162
    %676 = vmatprep.subr.mxu0 0.0
    %677 = vmatpush1.msra.mxu0 %v163
    %678 = vmatprep.subr.mxu0 0.0
    %679 = vmatpush1.msra.mxu0 %v164
    %680 = vmatprep.subr.mxu0 0.0
    %681 = vmatpush1.msra.mxu0 %v165
    %682 = vmatprep.subr.mxu0 0.0
    %683 = vmatpush1.msra.mxu0 %v166
    %684 = vmatprep.subr.mxu0 0.0
    %685 = vmatpush1.msra.mxu0 %v167
    %686 = vmatprep.subr.mxu0 0.0
    %687 = vmatpush1.msra.mxu0 %v168
    %688 = vmatprep.subr.mxu0 0.0
    %689 = vmatpush1.msra.mxu0 %v169
    %690 = vmatprep.subr.mxu0 0.0
    %691 = vmatpush1.msra.mxu0 %v170
    %692 = vmatprep.subr.mxu0 0.0
    %693 = vmatpush1.msra.mxu0 %v171
    %694 = vmatprep.subr.mxu0 0.0
    %695 = vmatpush1.msra.mxu0 %v172
    %696 = vmatprep.subr.mxu0 0.0
    %697 = vmatpush1.msra.mxu0 %v173
    %698 = vmatprep.subr.mxu0 0.0
    %699 = vmatpush1.msra.mxu0 %v174
    %700 = vmatprep.subr.mxu0 0.0
    %701 = vmatpush1.msra.mxu0 %v175
    %702 = vmatprep.subr.mxu0 0.0
    %703 = vmatpush1.msra.mxu0 %v176
    %704 = vmatprep.subr.mxu0 0.0
    %705 = vmatpush1.msra.mxu0 %v177
    %706 = vmatprep.subr.mxu0 0.0
    %707 = vmatpush1.msra.mxu0 %v178
    %708 = vmatprep.subr.mxu0 0.0
    %709 = vmatpush1.msra.mxu0 %v179
    %710 = vmatprep.subr.mxu0 0.0
    %711 = vmatpush1.msra.mxu0 %v180
    %712 = vmatprep.mubr.f32.mxu0 %v91
    %713 = vmatmul.mubr.f32.gmra.mrb[0].mxu0 %v90
    %v714 = vpop.f32.mrb[0].mxu0
    %v715 = vadd.f32 %v645, %v714
    %v716 = vpop.f32.mrb[0].mxu0
    %717 = vdwg.mxu0
    %718 = vmatprep.subr.mxu0 0.0
    %719 = vmatpush1.msra.mxu0 %v181
    %720 = vmatprep.subr.mxu0 0.0
    %721 = vmatpush1.msra.mxu0 %v182
    %722 = vmatprep.subr.mxu0 0.0
    %723 = vmatpush1.msra.mxu0 %v183
    %724 = vmatprep.subr.mxu0 0.0
    %725 = vmatpush1.msra.mxu0 %v184
    %726 = vmatprep.subr.mxu0 0.0
    %727 = vmatpush1.msra.mxu0 %v185
    %728 = vmatprep.subr.mxu0 0.0
    %729 = vmatpush1.msra.mxu0 %v186
    %730 = vmatprep.subr.mxu0 0.0
    %731 = vmatpush1.msra.mxu0 %v187
    %732 = vmatprep.subr.mxu0 0.0
    %733 = vmatpush1.msra.mxu0 %v188
    %734 = vmatprep.subr.mxu0 0.0
    %735 = vmatpush1.msra.mxu0 %v189
    %736 = vmatprep.subr.mxu0 0.0
    %737 = vmatpush1.msra.mxu0 %v190
    %738 = vmatprep.subr.mxu0 0.0
    %739 = vmatpush1.msra.mxu0 %v191
    %740 = vmatprep.subr.mxu0 0.0
    %741 = vmatpush1.msra.mxu0 %v192
    %742 = vmatprep.subr.mxu0 0.0
    %743 = vmatpush1.msra.mxu0 %v193
    %744 = vmatprep.subr.mxu0 0.0
    %745 = vmatpush1.msra.mxu0 %v194
    %746 = vmatprep.subr.mxu0 0.0
    %747 = vmatpush1.msra.mxu0 %v195
    %748 = vmatprep.subr.mxu0 0.0
    %749 = vmatpush1.msra.mxu0 %v196
    %750 = vmatprep.subr.mxu0 0.0
    %751 = vmatpush1.msra.mxu0 %v197
    %752 = vmatprep.subr.mxu0 0.0
    %753 = vmatpush1.msra.mxu0 %v198
    %754 = vmatprep.subr.mxu0 0.0
    %755 = vmatpush1.msra.mxu0 %v199
    %756 = vmatprep.subr.mxu0 0.0
    %757 = vmatpush1.msra.mxu0 %v200
    %758 = vmatprep.subr.mxu0 0.0
    %759 = vmatpush1.msra.mxu0 %v201
    %760 = vmatprep.subr.mxu0 0.0
    %761 = vmatpush1.msra.mxu0 %v202
    %762 = vmatprep.subr.mxu0 0.0
    %763 = vmatpush1.msra.mxu0 %v203
    %764 = vmatprep.subr.mxu0 0.0
    %765 = vmatpush1.msra.mxu0 %v204
    %766 = vmatprep.subr.mxu0 0.0
    %767 = vmatpush1.msra.mxu0 %v205
    %768 = vmatprep.subr.mxu0 0.0
    %769 = vmatpush1.msra.mxu0 %v206
    %770 = vmatprep.subr.mxu0 0.0
    %771 = vmatpush1.msra.mxu0 %v207
    %772 = vmatprep.subr.mxu0 0.0
    %773 = vmatpush1.msra.mxu0 %v208
    %774 = vmatprep.subr.mxu0 0.0
    %775 = vmatpush1.msra.mxu0 %v209
    %776 = vmatprep.subr.mxu0 0.0
    %777 = vmatpush1.msra.mxu0 %v210
    %778 = vmatprep.subr.mxu0 0.0
    %779 = vmatpush1.msra.mxu0 %v211
    %780 = vmatprep.subr.mxu0 0.0
    %781 = vmatpush1.msra.mxu0 %v212
    %782 = vmatprep.mubr.f32.mxu0 %v93
    %783 = vmatmul.mubr.f32.gmra.mrb[0].mxu0 %v92
    %v784 = vpop.f32.mrb[0].mxu0
    %v785 = vadd.f32 %v715, %v784
    %v786 = vpop.f32.mrb[0].mxu0
    %787 = vdwg.mxu0
    %788 = vmatprep.subr.mxu0 0.0
    %789 = vmatpush1.msra.mxu0 %v213
    %790 = vmatprep.subr.mxu0 0.0
    %791 = vmatpush1.msra.mxu0 %v214
    %792 = vmatprep.subr.mxu0 0.0
    %793 = vmatpush1.msra.mxu0 %v215
    %794 = vmatprep.subr.mxu0 0.0
    %795 = vmatpush1.msra.mxu0 %v216
    %796 = vmatprep.subr.mxu0 0.0
    %797 = vmatpush1.msra.mxu0 %v217
    %798 = vmatprep.subr.mxu0 0.0
    %799 = vmatpush1.msra.mxu0 %v218
    %800 = vmatprep.subr.mxu0 0.0
    %801 = vmatpush1.msra.mxu0 %v219
    %802 = vmatprep.subr.mxu0 0.0
    %803 = vmatpush1.msra.mxu0 %v220
    %804 = vmatprep.subr.mxu0 0.0
    %805 = vmatpush1.msra.mxu0 %v221
    %806 = vmatprep.subr.mxu0 0.0
    %807 = vmatpush1.msra.mxu0 %v222
    %808 = vmatprep.subr.mxu0 0.0
    %809 = vmatpush1.msra.mxu0 %v223
    %810 = vmatprep.subr.mxu0 0.0
    %811 = vmatpush1.msra.mxu0 %v224
    %812 = vmatprep.subr.mxu0 0.0
    %813 = vmatpush1.msra.mxu0 %v225
    %814 = vmatprep.subr.mxu0 0.0
    %815 = vmatpush1.msra.mxu0 %v226
    %816 = vmatprep.subr.mxu0 0.0
    %817 = vmatpush1.msra.mxu0 %v227
    %818 = vmatprep.subr.mxu0 0.0
    %819 = vmatpush1.msra.mxu0 %v228
    %820 = vmatprep.subr.mxu0 0.0
    %821 = vmatpush1.msra.mxu0 %v229
    %822 = vmatprep.subr.mxu0 0.0
    %823 = vmatpush1.msra.mxu0 %v230
    %824 = vmatprep.subr.mxu0 0.0
    %825 = vmatpush1.msra.mxu0 %v231
    %826 = vmatprep.subr.mxu0 0.0
    %827 = vmatpush1.msra.mxu0 %v232
    %828 = vmatprep.subr.mxu0 0.0
    %829 = vmatpush1.msra.mxu0 %v233
    %830 = vmatprep.subr.mxu0 0.0
    %831 = vmatpush1.msra.mxu0 %v234
    %832 = vmatprep.subr.mxu0 0.0
    %833 = vmatpush1.msra.mxu0 %v235
    %834 = vmatprep.subr.mxu0 0.0
    %835 = vmatpush1.msra.mxu0 %v236
    %836 = vmatprep.subr.mxu0 0.0
    %837 = vmatpush1.msra.mxu0 %v237
    %838 = vmatprep.subr.mxu0 0.0
    %839 = vmatpush1.msra.mxu0 %v238
    %840 = vmatprep.subr.mxu0 0.0
    %841 = vmatpush1.msra.mxu0 %v239
    %842 = vmatprep.subr.mxu0 0.0
    %843 = vmatpush1.msra.mxu0 %v240
    %844 = vmatprep.subr.mxu0 0.0
    %845 = vmatpush1.msra.mxu0 %v241
    %846 = vmatprep.subr.mxu0 0.0
    %847 = vmatpush1.msra.mxu0 %v242
    %848 = vmatprep.subr.mxu0 0.0
    %849 = vmatpush1.msra.mxu0 %v243
    %850 = vmatprep.subr.mxu0 0.0
    %851 = vmatpush1.msra.mxu0 %v244
    %852 = vmatprep.mubr.f32.mxu0 %v95
    %853 = vmatmul.mubr.f32.gmra.mrb[0].mxu0 %v94
    %v854 = vpop.f32.mrb[0].mxu0
    %v855 = vadd.f32 %v785, %v854
    %v856 = vpop.f32.mrb[0].mxu0
    %857 = vdwg.mxu0
    %858 = vmatprep.subr.mxu0 0.0
    %859 = vmatpush1.msra.mxu0 %v245
    %860 = vmatprep.subr.mxu0 0.0
    %861 = vmatpush1.msra.mxu0 %v246
    %862 = vmatprep.subr.mxu0 0.0
    %863 = vmatpush1.msra.mxu0 %v247
    %864 = vmatprep.subr.mxu0 0.0
    %865 = vmatpush1.msra.mxu0 %v248
    %866 = vmatprep.subr.mxu0 0.0
    %867 = vmatpush1.msra.mxu0 %v249
    %868 = vmatprep.subr.mxu0 0.0
    %869 = vmatpush1.msra.mxu0 %v250
    %870 = vmatprep.subr.mxu0 0.0
    %871 = vmatpush1.msra.mxu0 %v251
    %872 = vmatprep.subr.mxu0 0.0
    %873 = vmatpush1.msra.mxu0 %v252
    %874 = vmatprep.subr.mxu0 0.0
    %875 = vmatpush1.msra.mxu0 %v253
    %876 = vmatprep.subr.mxu0 0.0
    %877 = vmatpush1.msra.mxu0 %v254
    %878 = vmatprep.subr.mxu0 0.0
    %879 = vmatpush1.msra.mxu0 %v255
    %880 = vmatprep.subr.mxu0 0.0
    %881 = vmatpush1.msra.mxu0 %v256
    %882 = vmatprep.subr.mxu0 0.0
    %883 = vmatpush1.msra.mxu0 %v257
    %884 = vmatprep.subr.mxu0 0.0
    %885 = vmatpush1.msra.mxu0 %v258
    %886 = vmatprep.subr.mxu0 0.0
    %887 = vmatpush1.msra.mxu0 %v259
    %888 = vmatprep.subr.mxu0 0.0
    %889 = vmatpush1.msra.mxu0 %v260
    %890 = vmatprep.subr.mxu0 0.0
    %891 = vmatpush1.msra.mxu0 %v261
    %892 = vmatprep.subr.mxu0 0.0
    %893 = vmatpush1.msra.mxu0 %v262
    %894 = vmatprep.subr.mxu0 0.0
    %895 = vmatpush1.msra.mxu0 %v263
    %896 = vmatprep.subr.mxu0 0.0
    %897 = vmatpush1.msra.mxu0 %v264
    %898 = vmatprep.subr.mxu0 0.0
    %899 = vmatpush1.msra.mxu0 %v265
    %900 = vmatprep.subr.mxu0 0.0
    %901 = vmatpush1.msra.mxu0 %v266
    %902 = vmatprep.subr.mxu0 0.0
    %903 = vmatpush1.msra.mxu0 %v267
    %904 = vmatprep.subr.mxu0 0.0
    %905 = vmatpush1.msra.mxu0 %v268
    %906 = vmatprep.subr.mxu0 0.0
    %907 = vmatpush1.msra.mxu0 %v269
    %908 = vmatprep.subr.mxu0 0.0
    %909 = vmatpush1.msra.mxu0 %v270
    %910 = vmatprep.subr.mxu0 0.0
    %911 = vmatpush1.msra.mxu0 %v271
    %912 = vmatprep.subr.mxu0 0.0
    %913 = vmatpush1.msra.mxu0 %v272
    %914 = vmatprep.subr.mxu0 0.0
    %915 = vmatpush1.msra.mxu0 %v273
    %916 = vmatprep.subr.mxu0 0.0
    %917 = vmatpush1.msra.mxu0 %v274
    %918 = vmatprep.subr.mxu0 0.0
    %919 = vmatpush1.msra.mxu0 %v275
    %920 = vmatprep.subr.mxu0 0.0
    %921 = vmatpush1.msra.mxu0 %v276
    %922 = vmatprep.mubr.f32.mxu0 %v97
    %923 = vmatmul.mubr.f32.gmra.mrb[0].mxu0 %v96
    %v924 = vpop.f32.mrb[0].mxu0
    %v925 = vadd.f32 %v855, %v924
    %v926 = vpop.f32.mrb[0].mxu0
    %927 = vdwg.mxu0
    %928 = vmatprep.subr.mxu0 0.0
    %929 = vmatpush1.msra.mxu0 %v277
    %930 = vmatprep.subr.mxu0 0.0
    %931 = vmatpush1.msra.mxu0 %v278
    %932 = vmatprep.subr.mxu0 0.0
    %933 = vmatpush1.msra.mxu0 %v279
    %934 = vmatprep.subr.mxu0 0.0
    %935 = vmatpush1.msra.mxu0 %v280
    %936 = vmatprep.subr.mxu0 0.0
    %937 = vmatpush1.msra.mxu0 %v281
    %938 = vmatprep.subr.mxu0 0.0
    %939 = vmatpush1.msra.mxu0 %v282
    %940 = vmatprep.subr.mxu0 0.0
    %941 = vmatpush1.msra.mxu0 %v283
    %942 = vmatprep.subr.mxu0 0.0
    %943 = vmatpush1.msra.mxu0 %v284
    %944 = vmatprep.subr.mxu0 0.0
    %945 = vmatpush1.msra.mxu0 %v285
    %946 = vmatprep.subr.mxu0 0.0
    %947 = vmatpush1.msra.mxu0 %v286
    %948 = vmatprep.subr.mxu0 0.0
    %949 = vmatpush1.msra.mxu0 %v287
    %950 = vmatprep.subr.mxu0 0.0
    %951 = vmatpush1.msra.mxu0 %v288
    %952 = vmatprep.subr.mxu0 0.0
    %953 = vmatpush1.msra.mxu0 %v289
    %954 = vmatprep.subr.mxu0 0.0
    %955 = vmatpush1.msra.mxu0 %v290
    %956 = vmatprep.subr.mxu0 0.0
    %957 = vmatpush1.msra.mxu0 %v291
    %958 = vmatprep.subr.mxu0 0.0
    %959 = vmatpush1.msra.mxu0 %v292
    %960 = vmatprep.subr.mxu0 0.0
    %961 = vmatpush1.msra.mxu0 %v293
    %962 = vmatprep.subr.mxu0 0.0
    %963 = vmatpush1.msra.mxu0 %v294
    %964 = vmatprep.subr.mxu0 0.0
    %965 = vmatpush1.msra.mxu0 %v295
    %966 = vmatprep.subr.mxu0 0.0
    %967 = vmatpush1.msra.mxu0 %v296
    %968 = vmatprep.subr.mxu0 0.0
    %969 = vmatpush1.msra.mxu0 %v297
    %970 = vmatprep.subr.mxu0 0.0
    %971 = vmatpush1.msra.mxu0 %v298
    %972 = vmatprep.subr.mxu0 0.0
    %973 = vmatpush1.msra.mxu0 %v299
    %974 = vmatprep.subr.mxu0 0.0
    %975 = vmatpush1.msra.mxu0 %v300
    %976 = vmatprep.subr.mxu0 0.0
    %977 = vmatpush1.msra.mxu0 %v301
    %978 = vmatprep.subr.mxu0 0.0
    %979 = vmatpush1.msra.mxu0 %v302
    %980 = vmatprep.subr.mxu0 0.0
    %981 = vmatpush1.msra.mxu0 %v303
    %982 = vmatprep.subr.mxu0 0.0
    %983 = vmatpush1.msra.mxu0 %v304
    %984 = vmatprep.subr.mxu0 0.0
    %985 = vmatpush1.msra.mxu0 %v305
    %986 = vmatprep.subr.mxu0 0.0
    %987 = vmatpush1.msra.mxu0 %v306
    %988 = vmatprep.subr.mxu0 0.0
    %989 = vmatpush1.msra.mxu0 %v307
    %990 = vmatprep.subr.mxu0 0.0
    %991 = vmatpush1.msra.mxu0 %v308
    %992 = vmatprep.mubr.f32.mxu0 %v99
    %993 = vmatmul.mubr.f32.gmra.mrb[0].mxu0 %v98
    %v994 = vpop.f32.mrb[0].mxu0
    %v995 = vadd.f32 %v925, %v994
    %v996 = vpop.f32.mrb[0].mxu0
    %997 = vdwg.mxu0
    %998 = vmatprep.subr.mxu0 0.0
    %999 = vmatpush1.msra.mxu0 %v309
    %1000 = vmatprep.subr.mxu0 0.0
    %1001 = vmatpush1.msra.mxu0 %v310
    %1002 = vmatprep.subr.mxu0 0.0
    %1003 = vmatpush1.msra.mxu0 %v311
    %1004 = vmatprep.subr.mxu0 0.0
    %1005 = vmatpush1.msra.mxu0 %v312
    %1006 = vmatprep.subr.mxu0 0.0
    %1007 = vmatpush1.msra.mxu0 %v313
    %1008 = vmatprep.subr.mxu0 0.0
    %1009 = vmatpush1.msra.mxu0 %v314
    %1010 = vmatprep.subr.mxu0 0.0
    %1011 = vmatpush1.msra.mxu0 %v315
    %1012 = vmatprep.subr.mxu0 0.0
    %1013 = vmatpush1.msra.mxu0 %v316
    %1014 = vmatprep.subr.mxu0 0.0
    %1015 = vmatpush1.msra.mxu0 %v317
    %1016 = vmatprep.subr.mxu0 0.0
    %1017 = vmatpush1.msra.mxu0 %v318
    %1018 = vmatprep.subr.mxu0 0.0
    %1019 = vmatpush1.msra.mxu0 %v319
    %1020 = vmatprep.subr.mxu0 0.0
    %1021 = vmatpush1.msra.mxu0 %v320
    %1022 = vmatprep.subr.mxu0 0.0
    %1023 = vmatpush1.msra.mxu0 %v321
    %1024 = vmatprep.subr.mxu0 0.0
    %1025 = vmatpush1.msra.mxu0 %v322
    %1026 = vmatprep.subr.mxu0 0.0
    %1027 = vmatpush1.msra.mxu0 %v323
    %1028 = vmatprep.subr.mxu0 0.0
    %1029 = vmatpush1.msra.mxu0 %v324
    %1030 = vmatprep.subr.mxu0 0.0
    %1031 = vmatpush1.msra.mxu0 %v325
    %1032 = vmatprep.subr.mxu0 0.0
    %1033 = vmatpush1.msra.mxu0 %v326
    %1034 = vmatprep.subr.mxu0 0.0
    %1035 = vmatpush1.msra.mxu0 %v327
    %1036 = vmatprep.subr.mxu0 0.0
    %1037 = vmatpush1.msra.mxu0 %v328
    %1038 = vmatprep.subr.mxu0 0.0
    %1039 = vmatpush1.msra.mxu0 %v329
    %1040 = vmatprep.subr.mxu0 0.0
    %1041 = vmatpush1.msra.mxu0 %v330
    %1042 = vmatprep.subr.mxu0 0.0
    %1043 = vmatpush1.msra.mxu0 %v331
    %1044 = vmatprep.subr.mxu0 0.0
    %1045 = vmatpush1.msra.mxu0 %v332
    %1046 = vmatprep.subr.mxu0 0.0
    %1047 = vmatpush1.msra.mxu0 %v333
    %1048 = vmatprep.subr.mxu0 0.0
    %1049 = vmatpush1.msra.mxu0 %v334
    %1050 = vmatprep.subr.mxu0 0.0
    %1051 = vmatpush1.msra.mxu0 %v335
    %1052 = vmatprep.subr.mxu0 0.0
    %1053 = vmatpush1.msra.mxu0 %v336
    %1054 = vmatprep.subr.mxu0 0.0
    %1055 = vmatpush1.msra.mxu0 %v337
    %1056 = vmatprep.subr.mxu0 0.0
    %1057 = vmatpush1.msra.mxu0 %v338
    %1058 = vmatprep.subr.mxu0 0.0
    %1059 = vmatpush1.msra.mxu0 %v339
    %1060 = vmatprep.subr.mxu0 0.0
    %1061 = vmatpush1.msra.mxu0 %v340
    %1062 = vmatprep.mubr.f32.mxu0 %v101
    %1063 = vmatmul.mubr.f32.gmra.mrb[0].mxu0 %v100
    %v1064 = vpop.f32.mrb[0].mxu0
    %v1065 = vadd.f32 %v995, %v1064
    %v1066 = vpop.f32.mrb[0].mxu0
    %1067 = vdwg.mxu0
    %1068 = vmatprep.subr.mxu0 0.0
    %1069 = vmatpush1.msra.mxu0 %v341
    %1070 = vmatprep.subr.mxu0 0.0
    %1071 = vmatpush1.msra.mxu0 %v342
    %1072 = vmatprep.subr.mxu0 0.0
    %1073 = vmatpush1.msra.mxu0 %v343
    %1074 = vmatprep.subr.mxu0 0.0
    %1075 = vmatpush1.msra.mxu0 %v344
    %1076 = vmatprep.subr.mxu0 0.0
    %1077 = vmatpush1.msra.mxu0 %v345
    %1078 = vmatprep.subr.mxu0 0.0
    %1079 = vmatpush1.msra.mxu0 %v346
    %1080 = vmatprep.subr.mxu0 0.0
    %1081 = vmatpush1.msra.mxu0 %v347
    %1082 = vmatprep.subr.mxu0 0.0
    %1083 = vmatpush1.msra.mxu0 %v348
    %1084 = vmatprep.subr.mxu0 0.0
    %1085 = vmatpush1.msra.mxu0 %v349
    %1086 = vmatprep.subr.mxu0 0.0
    %1087 = vmatpush1.msra.mxu0 %v350
    %1088 = vmatprep.subr.mxu0 0.0
    %1089 = vmatpush1.msra.mxu0 %v351
    %1090 = vmatprep.subr.mxu0 0.0
    %1091 = vmatpush1.msra.mxu0 %v352
    %1092 = vmatprep.subr.mxu0 0.0
    %1093 = vmatpush1.msra.mxu0 %v353
    %1094 = vmatprep.subr.mxu0 0.0
    %1095 = vmatpush1.msra.mxu0 %v354
    %1096 = vmatprep.subr.mxu0 0.0
    %1097 = vmatpush1.msra.mxu0 %v355
    %1098 = vmatprep.subr.mxu0 0.0
    %1099 = vmatpush1.msra.mxu0 %v356
    %1100 = vmatprep.subr.mxu0 0.0
    %1101 = vmatpush1.msra.mxu0 %v357
    %1102 = vmatprep.subr.mxu0 0.0
    %1103 = vmatpush1.msra.mxu0 %v358
    %1104 = vmatprep.subr.mxu0 0.0
    %1105 = vmatpush1.msra.mxu0 %v359
    %1106 = vmatprep.subr.mxu0 0.0
    %1107 = vmatpush1.msra.mxu0 %v360
    %1108 = vmatprep.subr.mxu0 0.0
    %1109 = vmatpush1.msra.mxu0 %v361
    %1110 = vmatprep.subr.mxu0 0.0
    %1111 = vmatpush1.msra.mxu0 %v362
    %1112 = vmatprep.subr.mxu0 0.0
    %1113 = vmatpush1.msra.mxu0 %v363
    %1114 = vmatprep.subr.mxu0 0.0
    %1115 = vmatpush1.msra.mxu0 %v364
    %1116 = vmatprep.subr.mxu0 0.0
    %1117 = vmatpush1.msra.mxu0 %v365
    %1118 = vmatprep.subr.mxu0 0.0
    %1119 = vmatpush1.msra.mxu0 %v366
    %1120 = vmatprep.subr.mxu0 0.0
    %1121 = vmatpush1.msra.mxu0 %v367
    %1122 = vmatprep.subr.mxu0 0.0
    %1123 = vmatpush1.msra.mxu0 %v368
    %1124 = vmatprep.subr.mxu0 0.0
    %1125 = vmatpush1.msra.mxu0 %v369
    %1126 = vmatprep.subr.mxu0 0.0
    %1127 = vmatpush1.msra.mxu0 %v370
    %1128 = vmatprep.subr.mxu0 0.0
    %1129 = vmatpush1.msra.mxu0 %v371
    %1130 = vmatprep.subr.mxu0 0.0
    %1131 = vmatpush1.msra.mxu0 %v372
    %1132 = vmatprep.mubr.f32.mxu0 %v103
    %1133 = vmatmul.mubr.f32.gmra.mrb[0].mxu0 %v102
    %v1134 = vpop.f32.mrb[0].mxu0
    %v1135 = vadd.f32 %v1065, %v1134
    %v1136 = vpop.f32.mrb[0].mxu0
    %1137 = vdwg.mxu0
    %1138 = vmatprep.subr.mxu0 0.0
    %1139 = vmatpush1.msra.mxu0 %v373
    %1140 = vmatprep.subr.mxu0 0.0
    %1141 = vmatpush1.msra.mxu0 %v374
    %1142 = vmatprep.subr.mxu0 0.0
    %1143 = vmatpush1.msra.mxu0 %v375
    %1144 = vmatprep.subr.mxu0 0.0
    %1145 = vmatpush1.msra.mxu0 %v376
    %1146 = vmatprep.subr.mxu0 0.0
    %1147 = vmatpush1.msra.mxu0 %v377
    %1148 = vmatprep.subr.mxu0 0.0
    %1149 = vmatpush1.msra.mxu0 %v378
    %1150 = vmatprep.subr.mxu0 0.0
    %1151 = vmatpush1.msra.mxu0 %v379
    %1152 = vmatprep.subr.mxu0 0.0
    %1153 = vmatpush1.msra.mxu0 %v380
    %1154 = vmatprep.subr.mxu0 0.0
    %1155 = vmatpush1.msra.mxu0 %v381
    %1156 = vmatprep.subr.mxu0 0.0
    %1157 = vmatpush1.msra.mxu0 %v382
    %1158 = vmatprep.subr.mxu0 0.0
    %1159 = vmatpush1.msra.mxu0 %v383
    %1160 = vmatprep.subr.mxu0 0.0
    %1161 = vmatpush1.msra.mxu0 %v384
    %1162 = vmatprep.subr.mxu0 0.0
    %1163 = vmatpush1.msra.mxu0 %v385
    %1164 = vmatprep.subr.mxu0 0.0
    %1165 = vmatpush1.msra.mxu0 %v386
    %1166 = vmatprep.subr.mxu0 0.0
    %1167 = vmatpush1.msra.mxu0 %v387
    %1168 = vmatprep.subr.mxu0 0.0
    %1169 = vmatpush1.msra.mxu0 %v388
    %1170 = vmatprep.subr.mxu0 0.0
    %1171 = vmatpush1.msra.mxu0 %v389
    %1172 = vmatprep.subr.mxu0 0.0
    %1173 = vmatpush1.msra.mxu0 %v390
    %1174 = vmatprep.subr.mxu0 0.0
    %1175 = vmatpush1.msra.mxu0 %v391
    %1176 = vmatprep.subr.mxu0 0.0
    %1177 = vmatpush1.msra.mxu0 %v392
    %1178 = vmatprep.subr.mxu0 0.0
    %1179 = vmatpush1.msra.mxu0 %v393
    %1180 = vmatprep.subr.mxu0 0.0
    %1181 = vmatpush1.msra.mxu0 %v394
    %1182 = vmatprep.subr.mxu0 0.0
    %1183 = vmatpush1.msra.mxu0 %v395
    %1184 = vmatprep.subr.mxu0 0.0
    %1185 = vmatpush1.msra.mxu0 %v396
    %1186 = vmatprep.subr.mxu0 0.0
    %1187 = vmatpush1.msra.mxu0 %v397
    %1188 = vmatprep.subr.mxu0 0.0
    %1189 = vmatpush1.msra.mxu0 %v398
    %1190 = vmatprep.subr.mxu0 0.0
    %1191 = vmatpush1.msra.mxu0 %v399
    %1192 = vmatprep.subr.mxu0 0.0
    %1193 = vmatpush1.msra.mxu0 %v400
    %1194 = vmatprep.subr.mxu0 0.0
    %1195 = vmatpush1.msra.mxu0 %v401
    %1196 = vmatprep.subr.mxu0 0.0
    %1197 = vmatpush1.msra.mxu0 %v402
    %1198 = vmatprep.subr.mxu0 0.0
    %1199 = vmatpush1.msra.mxu0 %v403
    %1200 = vmatprep.subr.mxu0 0.0
    %1201 = vmatpush1.msra.mxu0 %v404
    %1202 = vmatprep.mubr.f32.mxu0 %v105
    %1203 = vmatmul.mubr.f32.gmra.mrb[0].mxu0 %v104
    %v1204 = vpop.f32.mrb[0].mxu0
    %v1205 = vadd.f32 %v1135, %v1204
    %v1206 = vpop.f32.mrb[0].mxu0
    %1207 = vdwg.mxu0
    %1208 = vmatprep.subr.mxu0 0.0
    %1209 = vmatpush1.msra.mxu0 %v405
    %1210 = vmatprep.subr.mxu0 0.0
    %1211 = vmatpush1.msra.mxu0 %v406
    %1212 = vmatprep.subr.mxu0 0.0
    %1213 = vmatpush1.msra.mxu0 %v407
    %1214 = vmatprep.subr.mxu0 0.0
    %1215 = vmatpush1.msra.mxu0 %v408
    %1216 = vmatprep.subr.mxu0 0.0
    %1217 = vmatpush1.msra.mxu0 %v409
    %1218 = vmatprep.subr.mxu0 0.0
    %1219 = vmatpush1.msra.mxu0 %v410
    %1220 = vmatprep.subr.mxu0 0.0
    %1221 = vmatpush1.msra.mxu0 %v411
    %1222 = vmatprep.subr.mxu0 0.0
    %1223 = vmatpush1.msra.mxu0 %v412
    %1224 = vmatprep.subr.mxu0 0.0
    %1225 = vmatpush1.msra.mxu0 %v413
    %1226 = vmatprep.subr.mxu0 0.0
    %1227 = vmatpush1.msra.mxu0 %v414
    %1228 = vmatprep.subr.mxu0 0.0
    %1229 = vmatpush1.msra.mxu0 %v415
    %1230 = vmatprep.subr.mxu0 0.0
    %1231 = vmatpush1.msra.mxu0 %v416
    %1232 = vmatprep.subr.mxu0 0.0
    %1233 = vmatpush1.msra.mxu0 %v417
    %1234 = vmatprep.subr.mxu0 0.0
    %1235 = vmatpush1.msra.mxu0 %v418
    %1236 = vmatprep.subr.mxu0 0.0
    %1237 = vmatpush1.msra.mxu0 %v419
    %1238 = vmatprep.subr.mxu0 0.0
    %1239 = vmatpush1.msra.mxu0 %v420
    %1240 = vmatprep.subr.mxu0 0.0
    %1241 = vmatpush1.msra.mxu0 %v421
    %1242 = vmatprep.subr.mxu0 0.0
    %1243 = vmatpush1.msra.mxu0 %v422
    %1244 = vmatprep.subr.mxu0 0.0
    %1245 = vmatpush1.msra.mxu0 %v423
    %1246 = vmatprep.subr.mxu0 0.0
    %1247 = vmatpush1.msra.mxu0 %v424
    %1248 = vmatprep.subr.mxu0 0.0
    %1249 = vmatpush1.msra.mxu0 %v425
    %1250 = vmatprep.subr.mxu0 0.0
    %1251 = vmatpush1.msra.mxu0 %v426
    %1252 = vmatprep.subr.mxu0 0.0
    %1253 = vmatpush1.msra.mxu0 %v427
    %1254 = vmatprep.subr.mxu0 0.0
    %1255 = vmatpush1.msra.mxu0 %v428
    %1256 = vmatprep.subr.mxu0 0.0
    %1257 = vmatpush1.msra.mxu0 %v429
    %1258 = vmatprep.subr.mxu0 0.0
    %1259 = vmatpush1.msra.mxu0 %v430
    %1260 = vmatprep.subr.mxu0 0.0
    %1261 = vmatpush1.msra.mxu0 %v431
    %1262 = vmatprep.subr.mxu0 0.0
    %1263 = vmatpush1.msra.mxu0 %v432
    %1264 = vmatprep.subr.mxu0 0.0
    %1265 = vmatpush1.msra.mxu0 %v433
    %1266 = vmatprep.subr.mxu0 0.0
    %1267 = vmatpush1.msra.mxu0 %v434
    %1268 = vmatprep.subr.mxu0 0.0
    %1269 = vmatpush1.msra.mxu0 %v435
    %1270 = vmatprep.subr.mxu0 0.0
    %1271 = vmatpush1.msra.mxu0 %v436
    %1272 = vmatprep.mubr.f32.mxu0 %v107
    %1273 = vmatmul.mubr.f32.gmra.mrb[0].mxu0 %v106
    %v1274 = vpop.f32.mrb[0].mxu0
    %v1275 = vadd.f32 %v1205, %v1274
    %v1276 = vpop.f32.mrb[0].mxu0
    %1277 = vdwg.mxu0
    %1278 = vmatprep.subr.mxu0 0.0
    %1279 = vmatpush1.msra.mxu0 %v437
    %1280 = vmatprep.subr.mxu0 0.0
    %1281 = vmatpush1.msra.mxu0 %v438
    %1282 = vmatprep.subr.mxu0 0.0
    %1283 = vmatpush1.msra.mxu0 %v439
    %1284 = vmatprep.subr.mxu0 0.0
    %1285 = vmatpush1.msra.mxu0 %v440
    %1286 = vmatprep.subr.mxu0 0.0
    %1287 = vmatpush1.msra.mxu0 %v441
    %1288 = vmatprep.subr.mxu0 0.0
    %1289 = vmatpush1.msra.mxu0 %v442
    %1290 = vmatprep.subr.mxu0 0.0
    %1291 = vmatpush1.msra.mxu0 %v443
    %1292 = vmatprep.subr.mxu0 0.0
    %1293 = vmatpush1.msra.mxu0 %v444
    %1294 = vmatprep.subr.mxu0 0.0
    %1295 = vmatpush1.msra.mxu0 %v445
    %1296 = vmatprep.subr.mxu0 0.0
    %1297 = vmatpush1.msra.mxu0 %v446
    %1298 = vmatprep.subr.mxu0 0.0
    %1299 = vmatpush1.msra.mxu0 %v447
    %1300 = vmatprep.subr.mxu0 0.0
    %1301 = vmatpush1.msra.mxu0 %v448
    %1302 = vmatprep.subr.mxu0 0.0
    %1303 = vmatpush1.msra.mxu0 %v449
    %1304 = vmatprep.subr.mxu0 0.0
    %1305 = vmatpush1.msra.mxu0 %v450
    %1306 = vmatprep.subr.mxu0 0.0
    %1307 = vmatpush1.msra.mxu0 %v451
    %1308 = vmatprep.subr.mxu0 0.0
    %1309 = vmatpush1.msra.mxu0 %v452
    %1310 = vmatprep.subr.mxu0 0.0
    %1311 = vmatpush1.msra.mxu0 %v453
    %1312 = vmatprep.subr.mxu0 0.0
    %1313 = vmatpush1.msra.mxu0 %v454
    %1314 = vmatprep.subr.mxu0 0.0
    %1315 = vmatpush1.msra.mxu0 %v455
    %1316 = vmatprep.subr.mxu0 0.0
    %1317 = vmatpush1.msra.mxu0 %v456
    %1318 = vmatprep.subr.mxu0 0.0
    %1319 = vmatpush1.msra.mxu0 %v457
    %1320 = vmatprep.subr.mxu0 0.0
    %1321 = vmatpush1.msra.mxu0 %v458
    %1322 = vmatprep.subr.mxu0 0.0
    %1323 = vmatpush1.msra.mxu0 %v459
    %1324 = vmatprep.subr.mxu0 0.0
    %1325 = vmatpush1.msra.mxu0 %v460
    %1326 = vmatprep.subr.mxu0 0.0
    %1327 = vmatpush1.msra.mxu0 %v461
    %1328 = vmatprep.subr.mxu0 0.0
    %1329 = vmatpush1.msra.mxu0 %v462
    %1330 = vmatprep.subr.mxu0 0.0
    %1331 = vmatpush1.msra.mxu0 %v463
    %1332 = vmatprep.subr.mxu0 0.0
    %1333 = vmatpush1.msra.mxu0 %v464
    %1334 = vmatprep.subr.mxu0 0.0
    %1335 = vmatpush1.msra.mxu0 %v465
    %1336 = vmatprep.subr.mxu0 0.0
    %1337 = vmatpush1.msra.mxu0 %v466
    %1338 = vmatprep.subr.mxu0 0.0
    %1339 = vmatpush1.msra.mxu0 %v467
    %1340 = vmatprep.subr.mxu0 0.0
    %1341 = vmatpush1.msra.mxu0 %v468
    %1342 = vmatprep.mubr.f32.mxu0 %v109
    %1343 = vmatmul.mubr.f32.gmra.mrb[0].mxu0 %v108
    %v1344 = vpop.f32.mrb[0].mxu0
    %v1345 = vadd.f32 %v1275, %v1344
    %v1346 = vpop.f32.mrb[0].mxu0
    %1347 = vdwg.mxu0
    %1348 = vmatprep.subr.mxu0 0.0
    %1349 = vmatpush1.msra.mxu0 %v469
    %1350 = vmatprep.subr.mxu0 0.0
    %1351 = vmatpush1.msra.mxu0 %v470
    %1352 = vmatprep.subr.mxu0 0.0
    %1353 = vmatpush1.msra.mxu0 %v471
    %1354 = vmatprep.subr.mxu0 0.0
    %1355 = vmatpush1.msra.mxu0 %v472
    %1356 = vmatprep.subr.mxu0 0.0
    %1357 = vmatpush1.msra.mxu0 %v473
    %1358 = vmatprep.subr.mxu0 0.0
    %1359 = vmatpush1.msra.mxu0 %v474
    %1360 = vmatprep.subr.mxu0 0.0
    %1361 = vmatpush1.msra.mxu0 %v475
    %1362 = vmatprep.subr.mxu0 0.0
    %1363 = vmatpush1.msra.mxu0 %v476
    %1364 = vmatprep.subr.mxu0 0.0
    %1365 = vmatpush1.msra.mxu0 %v477
    %1366 = vmatprep.subr.mxu0 0.0
    %1367 = vmatpush1.msra.mxu0 %v478
    %1368 = vmatprep.subr.mxu0 0.0
    %1369 = vmatpush1.msra.mxu0 %v479
    %1370 = vmatprep.subr.mxu0 0.0
    %1371 = vmatpush1.msra.mxu0 %v480
    %1372 = vmatprep.subr.mxu0 0.0
    %1373 = vmatpush1.msra.mxu0 %v481
    %1374 = vmatprep.subr.mxu0 0.0
    %1375 = vmatpush1.msra.mxu0 %v482
    %1376 = vmatprep.subr.mxu0 0.0
    %1377 = vmatpush1.msra.mxu0 %v483
    %1378 = vmatprep.subr.mxu0 0.0
    %1379 = vmatpush1.msra.mxu0 %v484
    %1380 = vmatprep.subr.mxu0 0.0
    %1381 = vmatpush1.msra.mxu0 %v485
    %1382 = vmatprep.subr.mxu0 0.0
    %1383 = vmatpush1.msra.mxu0 %v486
    %1384 = vmatprep.subr.mxu0 0.0
    %1385 = vmatpush1.msra.mxu0 %v487
    %1386 = vmatprep.subr.mxu0 0.0
    %1387 = vmatpush1.msra.mxu0 %v488
    %1388 = vmatprep.subr.mxu0 0.0
    %1389 = vmatpush1.msra.mxu0 %v489
    %1390 = vmatprep.subr.mxu0 0.0
    %1391 = vmatpush1.msra.mxu0 %v490
    %1392 = vmatprep.subr.mxu0 0.0
    %1393 = vmatpush1.msra.mxu0 %v491
    %1394 = vmatprep.subr.mxu0 0.0
    %1395 = vmatpush1.msra.mxu0 %v492
    %1396 = vmatprep.subr.mxu0 0.0
    %1397 = vmatpush1.msra.mxu0 %v493
    %1398 = vmatprep.subr.mxu0 0.0
    %1399 = vmatpush1.msra.mxu0 %v494
    %1400 = vmatprep.subr.mxu0 0.0
    %1401 = vmatpush1.msra.mxu0 %v495
    %1402 = vmatprep.subr.mxu0 0.0
    %1403 = vmatpush1.msra.mxu0 %v496
    %1404 = vmatprep.subr.mxu0 0.0
    %1405 = vmatpush1.msra.mxu0 %v497
    %1406 = vmatprep.subr.mxu0 0.0
    %1407 = vmatpush1.msra.mxu0 %v498
    %1408 = vmatprep.subr.mxu0 0.0
    %1409 = vmatpush1.msra.mxu0 %v499
    %1410 = vmatprep.subr.mxu0 0.0
    %1411 = vmatpush1.msra.mxu0 %v500
    %1412 = vmatprep.mubr.f32.mxu0 %v111
    %1413 = vmatmul.mubr.f32.gmra.mrb[0].mxu0 %v110
    %v1414 = vpop.f32.mrb[0].mxu0
    %v1415 = vadd.f32 %v1345, %v1414
    %v1416 = vpop.f32.mrb[0].mxu0
    %1417 = vdwg.mxu0
    %1418 = vmatprep.subr.mxu0 0.0
    %1419 = vmatpush1.msra.mxu0 %v501
    %1420 = vmatprep.subr.mxu0 0.0
    %1421 = vmatpush1.msra.mxu0 %v502
    %1422 = vmatprep.subr.mxu0 0.0
    %1423 = vmatpush1.msra.mxu0 %v503
    %1424 = vmatprep.subr.mxu0 0.0
    %1425 = vmatpush1.msra.mxu0 %v504
    %1426 = vmatprep.subr.mxu0 0.0
    %1427 = vmatpush1.msra.mxu0 %v505
    %1428 = vmatprep.subr.mxu0 0.0
    %1429 = vmatpush1.msra.mxu0 %v506
    %1430 = vmatprep.subr.mxu0 0.0
    %1431 = vmatpush1.msra.mxu0 %v507
    %1432 = vmatprep.subr.mxu0 0.0
    %1433 = vmatpush1.msra.mxu0 %v508
    %1434 = vmatprep.subr.mxu0 0.0
    %1435 = vmatpush1.msra.mxu0 %v509
    %1436 = vmatprep.subr.mxu0 0.0
    %1437 = vmatpush1.msra.mxu0 %v510
    %1438 = vmatprep.subr.mxu0 0.0
    %1439 = vmatpush1.msra.mxu0 %v511
    %1440 = vmatprep.subr.mxu0 0.0
    %1441 = vmatpush1.msra.mxu0 %v512
    %1442 = vmatprep.subr.mxu0 0.0
    %1443 = vmatpush1.msra.mxu0 %v513
    %1444 = vmatprep.subr.mxu0 0.0
    %1445 = vmatpush1.msra.mxu0 %v514
    %1446 = vmatprep.subr.mxu0 0.0
    %1447 = vmatpush1.msra.mxu0 %v515
    %1448 = vmatprep.subr.mxu0 0.0
    %1449 = vmatpush1.msra.mxu0 %v516
    %1450 = vmatprep.subr.mxu0 0.0
    %1451 = vmatpush1.msra.mxu0 %v517
    %1452 = vmatprep.subr.mxu0 0.0
    %1453 = vmatpush1.msra.mxu0 %v518
    %1454 = vmatprep.subr.mxu0 0.0
    %1455 = vmatpush1.msra.mxu0 %v519
    %1456 = vmatprep.subr.mxu0 0.0
    %1457 = vmatpush1.msra.mxu0 %v520
    %1458 = vmatprep.subr.mxu0 0.0
    %1459 = vmatpush1.msra.mxu0 %v521
    %1460 = vmatprep.subr.mxu0 0.0
    %1461 = vmatpush1.msra.mxu0 %v522
    %1462 = vmatprep.subr.mxu0 0.0
    %1463 = vmatpush1.msra.mxu0 %v523
    %1464 = vmatprep.subr.mxu0 0.0
    %1465 = vmatpush1.msra.mxu0 %v524
    %1466 = vmatprep.subr.mxu0 0.0
    %1467 = vmatpush1.msra.mxu0 %v525
    %1468 = vmatprep.subr.mxu0 0.0
    %1469 = vmatpush1.msra.mxu0 %v526
    %1470 = vmatprep.subr.mxu0 0.0
    %1471 = vmatpush1.msra.mxu0 %v527
    %1472 = vmatprep.subr.mxu0 0.0
    %1473 = vmatpush1.msra.mxu0 %v528
    %1474 = vmatprep.subr.mxu0 0.0
    %1475 = vmatpush1.msra.mxu0 %v529
    %1476 = vmatprep.subr.mxu0 0.0
    %1477 = vmatpush1.msra.mxu0 %v530
    %1478 = vmatprep.subr.mxu0 0.0
    %1479 = vmatpush1.msra.mxu0 %v531
    %1480 = vmatprep.subr.mxu0 0.0
    %1481 = vmatpush1.msra.mxu0 %v532
    %1482 = vmatprep.mubr.f32.mxu0 %v113
    %1483 = vmatmul.mubr.f32.gmra.mrb[0].mxu0 %v112
    %v1484 = vpop.f32.mrb[0].mxu0
    %v1485 = vadd.f32 %v1415, %v1484
    %v1486 = vpop.f32.mrb[0].mxu0
    %1487 = vdwg.mxu0
    %1488 = vmatprep.subr.mxu0 0.0
    %1489 = vmatpush1.msra.mxu0 %v533
    %1490 = vmatprep.subr.mxu0 0.0
    %1491 = vmatpush1.msra.mxu0 %v534
    %1492 = vmatprep.subr.mxu0 0.0
    %1493 = vmatpush1.msra.mxu0 %v535
    %1494 = vmatprep.subr.mxu0 0.0
    %1495 = vmatpush1.msra.mxu0 %v536
    %1496 = vmatprep.subr.mxu0 0.0
    %1497 = vmatpush1.msra.mxu0 %v537
    %1498 = vmatprep.subr.mxu0 0.0
    %1499 = vmatpush1.msra.mxu0 %v538
    %1500 = vmatprep.subr.mxu0 0.0
    %1501 = vmatpush1.msra.mxu0 %v539
    %1502 = vmatprep.subr.mxu0 0.0
    %1503 = vmatpush1.msra.mxu0 %v540
    %1504 = vmatprep.subr.mxu0 0.0
    %1505 = vmatpush1.msra.mxu0 %v541
    %1506 = vmatprep.subr.mxu0 0.0
    %1507 = vmatpush1.msra.mxu0 %v542
    %1508 = vmatprep.subr.mxu0 0.0
    %1509 = vmatpush1.msra.mxu0 %v543
    %1510 = vmatprep.subr.mxu0 0.0
    %1511 = vmatpush1.msra.mxu0 %v544
    %1512 = vmatprep.subr.mxu0 0.0
    %1513 = vmatpush1.msra.mxu0 %v545
    %1514 = vmatprep.subr.mxu0 0.0
    %1515 = vmatpush1.msra.mxu0 %v546
    %1516 = vmatprep.subr.mxu0 0.0
    %1517 = vmatpush1.msra.mxu0 %v547
    %1518 = vmatprep.subr.mxu0 0.0
    %1519 = vmatpush1.msra.mxu0 %v548
    %1520 = vmatprep.subr.mxu0 0.0
    %1521 = vmatpush1.msra.mxu0 %v549
    %1522 = vmatprep.subr.mxu0 0.0
    %1523 = vmatpush1.msra.mxu0 %v550
    %1524 = vmatprep.subr.mxu0 0.0
    %1525 = vmatpush1.msra.mxu0 %v551
    %1526 = vmatprep.subr.mxu0 0.0
    %1527 = vmatpush1.msra.mxu0 %v552
    %1528 = vmatprep.subr.mxu0 0.0
    %1529 = vmatpush1.msra.mxu0 %v553
    %1530 = vmatprep.subr.mxu0 0.0
    %1531 = vmatpush1.msra.mxu0 %v554
    %1532 = vmatprep.subr.mxu0 0.0
    %1533 = vmatpush1.msra.mxu0 %v555
    %1534 = vmatprep.subr.mxu0 0.0
    %1535 = vmatpush1.msra.mxu0 %v556
    %1536 = vmatprep.subr.mxu0 0.0
    %1537 = vmatpush1.msra.mxu0 %v557
    %1538 = vmatprep.subr.mxu0 0.0
    %1539 = vmatpush1.msra.mxu0 %v558
    %1540 = vmatprep.subr.mxu0 0.0
    %1541 = vmatpush1.msra.mxu0 %v559
    %1542 = vmatprep.subr.mxu0 0.0
    %1543 = vmatpush1.msra.mxu0 %v560
    %1544 = vmatprep.subr.mxu0 0.0
    %1545 = vmatpush1.msra.mxu0 %v561
    %1546 = vmatprep.subr.mxu0 0.0
    %1547 = vmatpush1.msra.mxu0 %v562
    %1548 = vmatprep.subr.mxu0 0.0
    %1549 = vmatpush1.msra.mxu0 %v563
    %1550 = vmatprep.subr.mxu0 0.0
    %1551 = vmatpush1.msra.mxu0 %v564
    %1552 = vmatprep.mubr.f32.mxu0 %v115
    %1553 = vmatmul.mubr.f32.gmra.mrb[0].mxu0 %v114
    %v1554 = vpop.f32.mrb[0].mxu0
    %v1555 = vadd.f32 %v1485, %v1554
    %v1556 = vpop.f32.mrb[0].mxu0
    %1557 = vdwg.mxu0
    %1558 = vmatprep.subr.mxu0 0.0
    %1559 = vmatpush1.msra.mxu0 %v565
    %1560 = vmatprep.subr.mxu0 0.0
    %1561 = vmatpush1.msra.mxu0 %v566
    %1562 = vmatprep.subr.mxu0 0.0
    %1563 = vmatpush1.msra.mxu0 0.0
    %1564 = vmatprep.subr.mxu0 0.0
    %1565 = vmatpush1.msra.mxu0 0.0
    %1566 = vmatprep.subr.mxu0 0.0
    %1567 = vmatpush1.msra.mxu0 0.0
    %1568 = vmatprep.subr.mxu0 0.0
    %1569 = vmatpush1.msra.mxu0 0.0
    %1570 = vmatprep.subr.mxu0 0.0
    %1571 = vmatpush1.msra.mxu0 0.0
    %1572 = vmatprep.subr.mxu0 0.0
    %1573 = vmatpush1.msra.mxu0 0.0
    %1574 = vmatprep.subr.mxu0 0.0
    %1575 = vmatpush1.msra.mxu0 0.0
    %1576 = vmatprep.subr.mxu0 0.0
    %1577 = vmatpush1.msra.mxu0 0.0
    %1578 = vmatprep.subr.mxu0 0.0
    %1579 = vmatpush1.msra.mxu0 0.0
    %1580 = vmatprep.subr.mxu0 0.0
    %1581 = vmatpush1.msra.mxu0 0.0
    %1582 = vmatprep.subr.mxu0 0.0
    %1583 = vmatpush1.msra.mxu0 0.0
    %1584 = vmatprep.subr.mxu0 0.0
    %1585 = vmatpush1.msra.mxu0 0.0
    %1586 = vmatprep.subr.mxu0 0.0
    %1587 = vmatpush1.msra.mxu0 0.0
    %1588 = vmatprep.subr.mxu0 0.0
    %1589 = vmatpush1.msra.mxu0 0.0
    %1590 = vmatprep.subr.mxu0 0.0
    %1591 = vmatpush1.msra.mxu0 0.0
    %1592 = vmatprep.subr.mxu0 0.0
    %1593 = vmatpush1.msra.mxu0 0.0
    %1594 = vmatprep.subr.mxu0 0.0
    %1595 = vmatpush1.msra.mxu0 0.0
    %1596 = vmatprep.subr.mxu0 0.0
    %1597 = vmatpush1.msra.mxu0 0.0
    %1598 = vmatprep.subr.mxu0 0.0
    %1599 = vmatpush1.msra.mxu0 0.0
    %1600 = vmatprep.subr.mxu0 0.0
    %1601 = vmatpush1.msra.mxu0 0.0
    %1602 = vmatprep.subr.mxu0 0.0
    %1603 = vmatpush1.msra.mxu0 0.0
    %1604 = vmatprep.subr.mxu0 0.0
    %1605 = vmatpush1.msra.mxu0 0.0
    %1606 = vmatprep.subr.mxu0 0.0
    %1607 = vmatpush1.msra.mxu0 0.0
    %1608 = vmatprep.subr.mxu0 0.0
    %1609 = vmatpush1.msra.mxu0 0.0
    %1610 = vmatprep.subr.mxu0 0.0
    %1611 = vmatpush1.msra.mxu0 0.0
    %1612 = vmatprep.subr.mxu0 0.0
    %1613 = vmatpush1.msra.mxu0 0.0
    %1614 = vmatprep.subr.mxu0 0.0
    %1615 = vmatpush1.msra.mxu0 0.0
    %1616 = vmatprep.subr.mxu0 0.0
    %1617 = vmatpush1.msra.mxu0 0.0
    %1618 = vmatprep.subr.mxu0 0.0
    %1619 = vmatpush1.msra.mxu0 0.0
    %1620 = vmatprep.subr.mxu0 0.0
    %1621 = vmatpush1.msra.mxu0 0.0
    %1622 = vmatprep.mubr.f32.mxu0 0.0
    %1623 = vmatmul.mubr.f32.gmra.mrb[0].mxu0 %v576
    %v1624 = vpop.f32.mrb[0].mxu0
    %v1625 = vadd.f32 %v1555, %v1624
    %v1626 = vpop.f32.mrb[0].mxu0
    %1627 = vdwg.mxu0
    %v1628 = vmax.f32 %v1625, 0.0
    %v1629 = vld [vmem:[%s3] sm:$0xff]
    %v1630 = vld [vmem:[%s3 + $0x8] sm:$0xff]
    %v1631 = vld [vmem:[%s3 + $0x10] sm:$0xff]
    %v1632 = vld [vmem:[%s3 + $0x18] sm:$0xff]
    %v1633 = vld [vmem:[%s3 + $0x20] sm:$0xff]
    %v1634 = vld [vmem:[%s3 + $0x28] sm:$0xff]
    %v1635 = vld [vmem:[%s3 + $0x30] sm:$0xff]
    %v1636 = vld [vmem:[%s3 + $0x38] sm:$0xff]
    %v1637 = vld [vmem:[%s3 + $0x40] sm:$0xff]
    %v1638 = vld [vmem:[%s3 + $0x48] sm:$0xff]
    %v1639 = vld [vmem:[%s3 + $0x50] sm:$0xff]
    %v1640 = vld [vmem:[%s3 + $0x58] sm:$0xff]
    %v1641 = vld [vmem:[%s3 + $0x60] sm:$0xff]
    %v1642 = vld [vmem:[%s3 + $0x68] sm:$0xff]
    %v1643 = vld [vmem:[%s3 + $0x70] sm:$0xff]
    %v1644 = vld [vmem:[%s3 + $0x78] sm:$0xff]
    %v1645 = vld [vmem:[#allocation8] sm:$0x1]
    %v1647 = vlaneseq
    %v1648 = vshrl.u32 %v1647, 7
    %v1649 = vsub.s32 0, %v1648
    %v1650 = vrot.slane %v1645, %v1649
    %1652 = vmatprep.subr.mxu0 0.0
    %1653 = vmatpush1.msra.mxu0 %v1629
    %1654 = vmatprep.subr.mxu0 0.0
    %1655 = vmatpush1.msra.mxu0 %v1630
    %1656 = vmatprep.subr.mxu0 0.0
    %1657 = vmatpush1.msra.mxu0 %v1631
    %1658 = vmatprep.subr.mxu0 0.0
    %1659 = vmatpush1.msra.mxu0 %v1632
    %1660 = vmatprep.subr.mxu0 0.0
    %1661 = vmatpush1.msra.mxu0 %v1633
    %1662 = vmatprep.subr.mxu0 0.0
    %1663 = vmatpush1.msra.mxu0 %v1634
    %1664 = vmatprep.subr.mxu0 0.0
    %1665 = vmatpush1.msra.mxu0 %v1635
    %1666 = vmatprep.subr.mxu0 0.0
    %1667 = vmatpush1.msra.mxu0 %v1636
    %1668 = vmatprep.subr.mxu0 0.0
    %1669 = vmatpush1.msra.mxu0 %v1637
    %1670 = vmatprep.subr.mxu0 0.0
    %1671 = vmatpush1.msra.mxu0 %v1638
    %1672 = vmatprep.subr.mxu0 0.0
    %1673 = vmatpush1.msra.mxu0 %v1639
    %1674 = vmatprep.subr.mxu0 0.0
    %1675 = vmatpush1.msra.mxu0 %v1640
    %1676 = vmatprep.subr.mxu0 0.0
    %1677 = vmatpush1.msra.mxu0 %v1641
    %1678 = vmatprep.subr.mxu0 0.0
    %1679 = vmatpush1.msra.mxu0 %v1642
    %1680 = vmatprep.subr.mxu0 0.0
    %1681 = vmatpush1.msra.mxu0 %v1643
    %1682 = vmatprep.subr.mxu0 0.0
    %1683 = vmatpush1.msra.mxu0 %v1644
    %1684 = vmatprep.subr.mxu0 0.0
    %1685 = vmatpush1.msra.mxu0 0.0
    %1686 = vmatprep.subr.mxu0 0.0
    %1687 = vmatpush1.msra.mxu0 0.0
    %1688 = vmatprep.subr.mxu0 0.0
    %1689 = vmatpush1.msra.mxu0 0.0
    %1690 = vmatprep.subr.mxu0 0.0
    %1691 = vmatpush1.msra.mxu0 0.0
    %1692 = vmatprep.subr.mxu0 0.0
    %1693 = vmatpush1.msra.mxu0 0.0
    %1694 = vmatprep.subr.mxu0 0.0
    %1695 = vmatpush1.msra.mxu0 0.0
    %1696 = vmatprep.subr.mxu0 0.0
    %1697 = vmatpush1.msra.mxu0 0.0
    %1698 = vmatprep.subr.mxu0 0.0
    %1699 = vmatpush1.msra.mxu0 0.0
    %1700 = vmatprep.subr.mxu0 0.0
    %1701 = vmatpush1.msra.mxu0 0.0
    %1702 = vmatprep.subr.mxu0 0.0
    %1703 = vmatpush1.msra.mxu0 0.0
    %1704 = vmatprep.subr.mxu0 0.0
    %1705 = vmatpush1.msra.mxu0 0.0
    %1706 = vmatprep.subr.mxu0 0.0
    %1707 = vmatpush1.msra.mxu0 0.0
    %1708 = vmatprep.subr.mxu0 0.0
    %1709 = vmatpush1.msra.mxu0 0.0
    %1710 = vmatprep.subr.mxu0 0.0
    %1711 = vmatpush1.msra.mxu0 0.0
    %1712 = vmatprep.subr.mxu0 0.0
    %1713 = vmatpush1.msra.mxu0 0.0
    %1714 = vmatprep.subr.mxu0 0.0
    %1715 = vmatpush1.msra.mxu0 0.0
    %1716 = vmatprep.mubr.f32.mxu0 0.0
    %1717 = vmatmul.mubr.f32.gmra.mrb[0].mxu0 %v1628
    %v1718 = vpop.f32.mrb[0].mxu0
    %v1719 = vadd.f32 %v1650, %v1718
    %v1720 = vpop.f32.mrb[0].mxu0
    %1721 = vdwg.mxu0
    %v1722 = vmax.f32 %v1719, 0.0
    %v1723 = vld [vmem:[#allocation10] sm:$0x1]
    %v1725 = vlaneseq
    %v1726 = vshrl.u32 %v1725, 7
    %v1727 = vsub.s32 0, %v1726
    %v1728 = vrot.slane %v1723, %v1727
    %v1730 = vmul.f32 %v1722, %v1728
    %vm1731 = vcmask 523264
    %v1732 = vsel %vm1731, %v1730, 0.0
    %1733 = vadd.xlane.f32.xlu0 %v1732
    %v1734 = vpop.xlane.xlu0 %1733
    %v1735 = vld [vmem:[#allocation2] sm:$0x1]
    %v1737 = vlaneseq
    %v1738 = vshrl.u32 %v1737, 7
    %v1739 = vsub.s32 0, %v1738
    %v1740 = vrot.slane %v1735, %v1739
    %v1742 = vadd.f32 %v1734, %v1740
    %vm1743 = vcmask 7168
    %1744 = vst.msk [vmem:[%s7] sm:$0xff] %vm1743, %v1742
    // Predicated region
    $region50: #{tpu_custom_call.1} parent=1 // pred_check
      _
    $region51: #{tpu_custom_call.1} parent=1 // pred_check_branch
      %1746 = sbr.rel (0) target = $region53
    $region52: #{tpu_custom_call.1} parent=1 // pred_region
      _
    $region53: #{tpu_custom_call.1} parent=1 // pred_fallthru
      _
    // Predicated region
    $region54: #{tpu_custom_call.1} parent=1 // pred_check
      _
    $region55: #{tpu_custom_call.1} parent=1 // pred_check_branch
      %1748 = sbr.rel (0) target = $region57
    $region56: #{tpu_custom_call.1} parent=1 // pred_region
      _
    $region57: #{tpu_custom_call.1} parent=1 // pred_fallthru
      _
    %1749 = vsyncpa [#allocation4], 1
    %1750 = vsyncpa [#allocation6], 1
    %1751 = vsyncpa [#allocation9], 1

</llo_original>
